<compile_context>
chip_gen: v6e
topology: v6e:2x2x1
jax: 0.10.0
libtpu: 0.0.40
codegen_flags: <defaults>
</compile_context>

<pallas_src>
import functools

import jax
import jax.numpy as jnp
from jax.experimental import pallas as pl
from jax.experimental.pallas import tpu as pltpu


def encoder_layer_kernel(x_ref, wq_ref, wk_ref, wv_ref, wfc_ref,
                         ln1_g_ref, ln1_b_ref,
                         w1_ref, b1_ref, w2_ref, b2_ref,
                         ln2_g_ref, ln2_b_ref,
                         out_ref, attn_ref,
                         *, tb, seq_len, n_head, d_k, d_v):
    # TODO(synk): slf_attn_mask path not implemented (forward default is None);
    # dropout omitted (inference-only).
    L, H = seq_len, n_head
    x = x_ref[0]                                      # (TB*L, d_model) f32
    xb = x.astype(jnp.bfloat16)

    # Row-batched QKV projections: bf16 operands on the MXU, f32 accumulation.
    q = jnp.dot(xb, wq_ref[...], preferred_element_type=jnp.float32)  # (TB*L, H*dk)
    k = jnp.dot(xb, wk_ref[...], preferred_element_type=jnp.float32)  # (TB*L, H*dk)
    v = jnp.dot(xb, wv_ref[...], preferred_element_type=jnp.float32)  # (TB*L, H*dv)

    # Head-major (H*TB, L, d) layout via lane slices + leading-axis concat
    # (cheap, layout-safe relayout: minor dim unchanged, sublane splits are
    # 8-aligned) so scores / softmax / attn@V are each ONE batched contraction
    # instead of a per-head matmul loop.
    def to_heads(m, dh):
        parts = [m[:, h * dh:(h + 1) * dh].reshape(tb, L, dh) for h in range(H)]
        return jnp.concatenate(parts, axis=0)         # (H*TB, L, dh)

    q3 = to_heads(q, d_k).astype(jnp.bfloat16)
    k3 = to_heads(k, d_k).astype(jnp.bfloat16)
    v3 = to_heads(v, d_v).astype(jnp.bfloat16)

    s = jnp.einsum('bqd,bkd->bqk', q3, k3,
                   preferred_element_type=jnp.float32)    # (H*TB, L, L) f32
    s = s * (1.0 / (d_k ** 0.5))       # temperature folded into one scalar mul

    # Softmax in f32; denominator reciprocal on the EUP slot (approx).
    s = s - jnp.max(s, axis=-1, keepdims=True)
    e = jnp.exp(s)
    a = e * pl.reciprocal(jnp.sum(e, axis=-1, keepdims=True), approx=True)

    # One slab store for the whole attention map (head-major; wrapper reorders).
    attn_ref[0] = a

    o3 = jnp.einsum('bqk,bkd->bqd', a.astype(jnp.bfloat16), v3,
                    preferred_element_type=jnp.float32)   # (H*TB, L, dv)
    # Back to row-major (TB*L, H*dv) for the output projection (lane concat).
    o = jnp.concatenate(
        [o3[h * tb:(h + 1) * tb].reshape(tb * L, d_v) for h in range(H)],
        axis=-1)

    o = jnp.dot(o.astype(jnp.bfloat16), wfc_ref[...],
                preferred_element_type=jnp.float32)
    h = o + x                                             # residual (f32)

    # LayerNorm 1 (eps=1e-6, biased variance — matches torch.nn.LayerNorm).
    mu = jnp.mean(h, axis=-1, keepdims=True)
    var = jnp.mean((h - mu) ** 2, axis=-1, keepdims=True)
    y = (h - mu) * jax.lax.rsqrt(var + 1e-6) * ln1_g_ref[...] + ln1_b_ref[...]

    # Position-wise FFN (bf16 matmuls, f32 bias / relu / residual).
    h1 = jnp.dot(y.astype(jnp.bfloat16), w1_ref[...],
                 preferred_element_type=jnp.float32) + b1_ref[...]
    h1 = jnp.maximum(h1, 0.0)
    h2 = jnp.dot(h1.astype(jnp.bfloat16), w2_ref[...],
                 preferred_element_type=jnp.float32) + b2_ref[...]
    h2 = h2 + y

    # LayerNorm 2.
    mu2 = jnp.mean(h2, axis=-1, keepdims=True)
    var2 = jnp.mean((h2 - mu2) ** 2, axis=-1, keepdims=True)
    out_ref[0] = ((h2 - mu2) * jax.lax.rsqrt(var2 + 1e-6)
                  * ln2_g_ref[...] + ln2_b_ref[...])


def _pick_block_b(batch, seq_len, target_rows=128):
    """Batch tile: fill ~target_rows MXU rows per step, keep >=2 grid steps when
    the batch allows (v7x has 2 TensorCores), and divide the batch evenly."""
    tb = max(1, min(batch, target_rows // max(seq_len, 1)))
    if batch >= 2 and batch // tb < 2:
        tb = max(1, batch // 2)
    while batch % tb:
        tb -= 1
    return tb


def encoder_layer(enc_input, params, *, n_head, d_k, d_v, block_b=None):
    B, L, d_model = enc_input.shape
    d_inner = params["w1"].shape[1]
    tb = _pick_block_b(B, L) if block_b is None else block_b
    assert B % tb == 0, "batch must be divisible by the batch tile"
    G = B // tb

    kernel = functools.partial(encoder_layer_kernel,
                               tb=tb, seq_len=L, n_head=n_head, d_k=d_k, d_v=d_v)

    # MXU weights in bf16 (native MXU dtype, halves weight HBM/VMEM traffic);
    # biases & LayerNorm affine params stay f32 (applied post-accumulation).
    cast = lambda w: w.astype(jnp.bfloat16)
    wq, wk, wv = cast(params["wq"]), cast(params["wk"]), cast(params["wv"])
    wfc, w1, w2 = cast(params["wfc"]), cast(params["w1"]), cast(params["w2"])

    # Batch-tiled row-major view of the input: (G, TB*L, d_model).
    x_tiled = enc_input.reshape(G, tb * L, d_model)

    def full(shape):
        # Constant index_map -> weights are not re-DMA'd per grid step.
        return pl.BlockSpec(shape, lambda b: (0,) * len(shape))

    in_specs = [
        pl.BlockSpec((1, tb * L, d_model), lambda b: (b, 0, 0)),
        full((d_model, n_head * d_k)),   # wq
        full((d_model, n_head * d_k)),   # wk
        full((d_model, n_head * d_v)),   # wv
        full((n_head * d_v, d_model)),   # wfc
        full((1, d_model)),              # ln1 gamma
        full((1, d_model)),              # ln1 beta
        full((d_model, d_inner)),        # w1
        full((1, d_inner)),              # b1
        full((d_inner, d_model)),        # w2
        full((1, d_model)),              # b2
        full((1, d_model)),              # ln2 gamma
        full((1, d_model)),              # ln2 beta
    ]
    out_specs = [
        pl.BlockSpec((1, tb * L, d_model), lambda b: (b, 0, 0)),
        pl.BlockSpec((1, n_head * tb, L, L), lambda b: (b, 0, 0, 0)),
    ]
    out_shape = [
        jax.ShapeDtypeStruct((G, tb * L, d_model), jnp.float32),
        jax.ShapeDtypeStruct((G, n_head * tb, L, L), jnp.float32),
    ]

    grid_spec = pltpu.PrefetchScalarGridSpec(
        num_scalar_prefetch=0,
        grid=(G,),
        in_specs=in_specs,
        out_specs=out_specs,
    )

    out_raw, attn_raw = pl.pallas_call(
        kernel,
        grid_spec=grid_spec,
        out_shape=out_shape,
        compiler_params=pltpu.CompilerParams(
            dimension_semantics=("parallel",)),
    )(x_tiled, wq, wk, wv, wfc,
      params["ln1_g"], params["ln1_b"],
      w1, params["b1"], w2, params["b2"],
      params["ln2_g"], params["ln2_b"])

    out = out_raw.reshape(B, L, d_model)
    # (G, H, TB, L, L) head-major -> (B, H, L, L); plain XLA outside the kernel.
    attn = attn_raw.reshape(G, n_head, tb, L, L).transpose(0, 2, 1, 3, 4)
    attn = attn.reshape(B, n_head, L, L)
    return out, attn


def encoder_layer_ref(x, p, *, n_head, d_k, d_v):
    """Pure-JAX (f32) reference mirroring the PyTorch forward."""
    B, L, d_model = x.shape
    residual = x
    q = (x @ p["wq"]).reshape(B, L, n_head, d_k).transpose(0, 2, 1, 3)
    k = (x @ p["wk"]).reshape(B, L, n_head, d_k).transpose(0, 2, 1, 3)
    v = (x @ p["wv"]).reshape(B, L, n_head, d_v).transpose(0, 2, 1, 3)
    s = jnp.einsum("bhqd,bhkd->bhqk", q / (d_k ** 0.5), k)
    attn = jax.nn.softmax(s, axis=-1)
    o = jnp.einsum("bhqk,bhkd->bhqd", attn, v)
    o = o.transpose(0, 2, 1, 3).reshape(B, L, n_head * d_v)
    o = o @ p["wfc"] + residual

    def ln(z, g, b):
        mu = jnp.mean(z, axis=-1, keepdims=True)
        var = jnp.mean((z - mu) ** 2, axis=-1, keepdims=True)
        return (z - mu) * jax.lax.rsqrt(var + 1e-6) * g + b

    o = ln(o, p["ln1_g"], p["ln1_b"])
    res2 = o
    h = jnp.maximum(o @ p["w1"] + p["b1"], 0.0)
    h = h @ p["w2"] + p["b2"] + res2
    out = ln(h, p["ln2_g"], p["ln2_b"])
    return out, attn


if __name__ == "__main__":
    # Small, module-consistent sizes (B=4 so the batch-tiled grid has 2 steps).
    B, L = 4, 8
    d_model, d_inner = 32, 64
    n_head, d_k, d_v = 4, 8, 8

    key = jax.random.PRNGKey(0)
    keys = jax.random.split(key, 9)
    scale = 0.05
    params = {
        # Linear weights stored pre-transposed: (in_features, out_features).
        "wq":  scale * jax.random.normal(keys[0], (d_model, n_head * d_k), jnp.float32),
        "wk":  scale * jax.random.normal(keys[1], (d_model, n_head * d_k), jnp.float32),
        "wv":  scale * jax.random.normal(keys[2], (d_model, n_head * d_v), jnp.float32),
        "wfc": scale * jax.random.normal(keys[3], (n_head * d_v, d_model), jnp.float32),
        "ln1_g": jnp.ones((1, d_model), jnp.float32),
        "ln1_b": jnp.zeros((1, d_model), jnp.float32),
        "w1":  scale * jax.random.normal(keys[4], (d_model, d_inner), jnp.float32),
        "b1":  scale * jax.random.normal(keys[5], (1, d_inner), jnp.float32),
        "w2":  scale * jax.random.normal(keys[6], (d_inner, d_model), jnp.float32),
        "b2":  scale * jax.random.normal(keys[7], (1, d_model), jnp.float32),
        "ln2_g": jnp.ones((1, d_model), jnp.float32),
        "ln2_b": jnp.zeros((1, d_model), jnp.float32),
    }
    enc_input = jax.random.normal(keys[8], (B, L, d_model), jnp.float32)

    out, attn = encoder_layer(enc_input, params, n_head=n_head, d_k=d_k, d_v=d_v)
    out = jax.block_until_ready(out)
    attn = jax.block_until_ready(attn)

    out_ref, attn_ref = encoder_layer_ref(enc_input, params,
                                          n_head=n_head, d_k=d_k, d_v=d_v)
    assert out.shape == (B, L, d_model)
    assert attn.shape == (B, n_head, L, L)
    # bf16 MXU operands + approx reciprocal in the kernel -> relaxed tolerances
    # against the pure-f32 reference.
    assert jnp.allclose(out, out_ref, atol=2e-2, rtol=2e-2), \
        float(jnp.max(jnp.abs(out - out_ref)))
    assert jnp.allclose(attn, attn_ref, atol=1e-2, rtol=1e-2), \
        float(jnp.max(jnp.abs(attn - attn_ref)))

    print("KERNEL_OK")
</pallas_src>

<mosaic_0001>
module attributes {stable_mosaic.version = 11 : i64} {
  func.func @encoder_layer_kernel(%arg0: i32, %arg1: memref<1x16x32xf32, #tpu.memory_space<vmem>>, %arg2: memref<32x32xbf16, #tpu.memory_space<vmem>>, %arg3: memref<32x32xbf16, #tpu.memory_space<vmem>>, %arg4: memref<32x32xbf16, #tpu.memory_space<vmem>>, %arg5: memref<32x32xbf16, #tpu.memory_space<vmem>>, %arg6: memref<1x32xf32, #tpu.memory_space<vmem>>, %arg7: memref<1x32xf32, #tpu.memory_space<vmem>>, %arg8: memref<32x64xbf16, #tpu.memory_space<vmem>>, %arg9: memref<1x64xf32, #tpu.memory_space<vmem>>, %arg10: memref<64x32xbf16, #tpu.memory_space<vmem>>, %arg11: memref<1x32xf32, #tpu.memory_space<vmem>>, %arg12: memref<1x32xf32, #tpu.memory_space<vmem>>, %arg13: memref<1x32xf32, #tpu.memory_space<vmem>>, %arg14: memref<1x16x32xf32, #tpu.memory_space<vmem>>, %arg15: memref<1x8x8x8xf32, #tpu.memory_space<vmem>>) attributes {dimension_semantics = [#tpu.dimension_semantics<parallel>], iteration_bounds = array<i64: 2>, scalar_prefetch = 0 : i64, scratch_operands = 0 : i64, tpu.core_type = #tpu.core_type<tc>, window_params = [{transform_indices = @transform_0, window_bounds = array<i64: 1, 16, 32>}, {pipeline_mode = #tpu.pipeline_mode<synchronous>, transform_indices = @transform_1, window_bounds = array<i64: 32, 32>}, {pipeline_mode = #tpu.pipeline_mode<synchronous>, transform_indices = @transform_2, window_bounds = array<i64: 32, 32>}, {pipeline_mode = #tpu.pipeline_mode<synchronous>, transform_indices = @transform_3, window_bounds = array<i64: 32, 32>}, {pipeline_mode = #tpu.pipeline_mode<synchronous>, transform_indices = @transform_4, window_bounds = array<i64: 32, 32>}, {pipeline_mode = #tpu.pipeline_mode<synchronous>, transform_indices = @transform_5, window_bounds = array<i64: 1, 32>}, {pipeline_mode = #tpu.pipeline_mode<synchronous>, transform_indices = @transform_6, window_bounds = array<i64: 1, 32>}, {pipeline_mode = #tpu.pipeline_mode<synchronous>, transform_indices = @transform_7, window_bounds = array<i64: 32, 64>}, {pipeline_mode = #tpu.pipeline_mode<synchronous>, transform_indices = @transform_8, window_bounds = array<i64: 1, 64>}, {pipeline_mode = #tpu.pipeline_mode<synchronous>, transform_indices = @transform_9, window_bounds = array<i64: 64, 32>}, {pipeline_mode = #tpu.pipeline_mode<synchronous>, transform_indices = @transform_10, window_bounds = array<i64: 1, 32>}, {pipeline_mode = #tpu.pipeline_mode<synchronous>, transform_indices = @transform_11, window_bounds = array<i64: 1, 32>}, {pipeline_mode = #tpu.pipeline_mode<synchronous>, transform_indices = @transform_12, window_bounds = array<i64: 1, 32>}, {transform_indices = @transform_13, window_bounds = array<i64: 1, 16, 32>}, {transform_indices = @transform_14, window_bounds = array<i64: 1, 8, 8, 8>}]} {
    %c0 = arith.constant 0 : index
    %c0_0 = arith.constant 0 : index
    %c0_1 = arith.constant 0 : index
    %0 = vector.load %arg1[%c0, %c0_0, %c0_1] : memref<1x16x32xf32, #tpu.memory_space<vmem>>, vector<1x16x32xf32>
    %1 = vector.shape_cast %0 : vector<1x16x32xf32> to vector<16x32xf32>
    %2 = arith.truncf %1 : vector<16x32xf32> to vector<16x32xbf16>
    %c0_2 = arith.constant 0 : index
    %c0_3 = arith.constant 0 : index
    %3 = vector.load %arg2[%c0_2, %c0_3] : memref<32x32xbf16, #tpu.memory_space<vmem>>, vector<32x32xbf16>
    %cst = arith.constant dense<0.000000e+00> : vector<16x32xf32>
    %4 = tpu.matmul %2, %3, %cst {dimension_numbers = #tpu.dot_dimension_numbers<[1], [0], [0], [1], [0, 0, 1, 1], [], []>} : vector<16x32xbf16>, vector<32x32xbf16>, vector<16x32xf32> -> vector<16x32xf32>
    %c0_4 = arith.constant 0 : index
    %c0_5 = arith.constant 0 : index
    %5 = vector.load %arg3[%c0_4, %c0_5] : memref<32x32xbf16, #tpu.memory_space<vmem>>, vector<32x32xbf16>
    %cst_6 = arith.constant dense<0.000000e+00> : vector<16x32xf32>
    %6 = tpu.matmul %2, %5, %cst_6 {dimension_numbers = #tpu.dot_dimension_numbers<[1], [0], [0], [1], [0, 0, 1, 1], [], []>} : vector<16x32xbf16>, vector<32x32xbf16>, vector<16x32xf32> -> vector<16x32xf32>
    %c0_7 = arith.constant 0 : index
    %c0_8 = arith.constant 0 : index
    %7 = vector.load %arg4[%c0_7, %c0_8] : memref<32x32xbf16, #tpu.memory_space<vmem>>, vector<32x32xbf16>
    %cst_9 = arith.constant dense<0.000000e+00> : vector<16x32xf32>
    %8 = tpu.matmul %2, %7, %cst_9 {dimension_numbers = #tpu.dot_dimension_numbers<[1], [0], [0], [1], [0, 0, 1, 1], [], []>} : vector<16x32xbf16>, vector<32x32xbf16>, vector<16x32xf32> -> vector<16x32xf32>
    %9 = vector.extract_strided_slice %4 {offsets = [0, 0], sizes = [16, 8], strides = [1, 1]} : vector<16x32xf32> to vector<16x8xf32>
    %10 = vector.shape_cast %9 : vector<16x8xf32> to vector<2x8x8xf32>
    %11 = vector.extract_strided_slice %4 {offsets = [0, 8], sizes = [16, 8], strides = [1, 1]} : vector<16x32xf32> to vector<16x8xf32>
    %12 = vector.shape_cast %11 : vector<16x8xf32> to vector<2x8x8xf32>
    %13 = vector.extract_strided_slice %4 {offsets = [0, 16], sizes = [16, 8], strides = [1, 1]} : vector<16x32xf32> to vector<16x8xf32>
    %14 = vector.shape_cast %13 : vector<16x8xf32> to vector<2x8x8xf32>
    %15 = vector.extract_strided_slice %4 {offsets = [0, 24], sizes = [16, 8], strides = [1, 1]} : vector<16x32xf32> to vector<16x8xf32>
    %16 = vector.shape_cast %15 : vector<16x8xf32> to vector<2x8x8xf32>
    %17 = tpu.concatenate %10, %12, %14, %16 in 0 : vector<2x8x8xf32>, vector<2x8x8xf32>, vector<2x8x8xf32>, vector<2x8x8xf32> -> vector<8x8x8xf32>
    %18 = arith.truncf %17 : vector<8x8x8xf32> to vector<8x8x8xbf16>
    %19 = vector.extract_strided_slice %6 {offsets = [0, 0], sizes = [16, 8], strides = [1, 1]} : vector<16x32xf32> to vector<16x8xf32>
    %20 = vector.shape_cast %19 : vector<16x8xf32> to vector<2x8x8xf32>
    %21 = vector.extract_strided_slice %6 {offsets = [0, 8], sizes = [16, 8], strides = [1, 1]} : vector<16x32xf32> to vector<16x8xf32>
    %22 = vector.shape_cast %21 : vector<16x8xf32> to vector<2x8x8xf32>
    %23 = vector.extract_strided_slice %6 {offsets = [0, 16], sizes = [16, 8], strides = [1, 1]} : vector<16x32xf32> to vector<16x8xf32>
    %24 = vector.shape_cast %23 : vector<16x8xf32> to vector<2x8x8xf32>
    %25 = vector.extract_strided_slice %6 {offsets = [0, 24], sizes = [16, 8], strides = [1, 1]} : vector<16x32xf32> to vector<16x8xf32>
    %26 = vector.shape_cast %25 : vector<16x8xf32> to vector<2x8x8xf32>
    %27 = tpu.concatenate %20, %22, %24, %26 in 0 : vector<2x8x8xf32>, vector<2x8x8xf32>, vector<2x8x8xf32>, vector<2x8x8xf32> -> vector<8x8x8xf32>
    %28 = arith.truncf %27 : vector<8x8x8xf32> to vector<8x8x8xbf16>
    %29 = vector.extract_strided_slice %8 {offsets = [0, 0], sizes = [16, 8], strides = [1, 1]} : vector<16x32xf32> to vector<16x8xf32>
    %30 = vector.shape_cast %29 : vector<16x8xf32> to vector<2x8x8xf32>
    %31 = vector.extract_strided_slice %8 {offsets = [0, 8], sizes = [16, 8], strides = [1, 1]} : vector<16x32xf32> to vector<16x8xf32>
    %32 = vector.shape_cast %31 : vector<16x8xf32> to vector<2x8x8xf32>
    %33 = vector.extract_strided_slice %8 {offsets = [0, 16], sizes = [16, 8], strides = [1, 1]} : vector<16x32xf32> to vector<16x8xf32>
    %34 = vector.shape_cast %33 : vector<16x8xf32> to vector<2x8x8xf32>
    %35 = vector.extract_strided_slice %8 {offsets = [0, 24], sizes = [16, 8], strides = [1, 1]} : vector<16x32xf32> to vector<16x8xf32>
    %36 = vector.shape_cast %35 : vector<16x8xf32> to vector<2x8x8xf32>
    %37 = tpu.concatenate %30, %32, %34, %36 in 0 : vector<2x8x8xf32>, vector<2x8x8xf32>, vector<2x8x8xf32>, vector<2x8x8xf32> -> vector<8x8x8xf32>
    %38 = arith.truncf %37 : vector<8x8x8xf32> to vector<8x8x8xbf16>
    "tpu.trace_start"() <{level = 10 : i32, message = "bqd,bkd->bqk"}> : () -> ()
    %cst_10 = arith.constant dense<0.000000e+00> : vector<8x8x8xf32>
    %39 = tpu.matmul %18, %28, %cst_10 {dimension_numbers = #tpu.dot_dimension_numbers<[2], [2], [1], [1], [0, 0, 0, 1, 1, 1], [0], [0]>} : vector<8x8x8xbf16>, vector<8x8x8xbf16>, vector<8x8x8xf32> -> vector<8x8x8xf32>
    "tpu.trace_stop"() : () -> ()
    %cst_11 = arith.constant 0.353553385 : f32
    %40 = vector.broadcast %cst_11 : f32 to vector<8x8x8xf32>
    %41 = arith.mulf %39, %40 : vector<8x8x8xf32>
    %cst_12 = arith.constant dense<0xFF800000> : vector<8x8xf32>
    %42 = vector.multi_reduction <maximumf>, %41, %cst_12 [2] : vector<8x8x8xf32> to vector<8x8xf32>
    %43 = vector.shape_cast %42 : vector<8x8xf32> to vector<8x8x1xf32>
    %44 = vector.broadcast %43 : vector<8x8x1xf32> to vector<8x8x8xf32>
    %45 = arith.subf %41, %44 : vector<8x8x8xf32>
    %46 = math.exp %45 : vector<8x8x8xf32>
    %cst_13 = arith.constant dense<0.000000e+00> : vector<8x8xf32>
    %47 = vector.multi_reduction <add>, %46, %cst_13 [2] : vector<8x8x8xf32> to vector<8x8xf32>
    %48 = vector.shape_cast %47 : vector<8x8xf32> to vector<8x8x1xf32>
    %49 = tpu.reciprocal %48 {approx = true} : vector<8x8x1xf32> -> vector<8x8x1xf32>
    %50 = vector.broadcast %49 : vector<8x8x1xf32> to vector<8x8x8xf32>
    %51 = arith.mulf %46, %50 : vector<8x8x8xf32>
    %c0_14 = arith.constant 0 : index
    %c0_15 = arith.constant 0 : index
    %c0_16 = arith.constant 0 : index
    %c0_17 = arith.constant 0 : index
    %52 = vector.load %arg15[%c0_14, %c0_15, %c0_16, %c0_17] : memref<1x8x8x8xf32, #tpu.memory_space<vmem>>, vector<1x8x8x8xf32>
    %53 = vector.shape_cast %52 : vector<1x8x8x8xf32> to vector<8x8x8xf32>
    %54 = vector.shape_cast %51 : vector<8x8x8xf32> to vector<1x8x8x8xf32>
    tpu.vector_store %arg15[%c0_14, %c0_15, %c0_16, %c0_17], %54 {strides = array<i32>} : memref<1x8x8x8xf32, #tpu.memory_space<vmem>>, vector<1x8x8x8xf32>,
    %55 = arith.truncf %51 : vector<8x8x8xf32> to vector<8x8x8xbf16>
    "tpu.trace_start"() <{level = 10 : i32, message = "bqk,bkd->bqd"}> : () -> ()
    %cst_18 = arith.constant dense<0.000000e+00> : vector<8x8x8xf32>
    %56 = tpu.matmul %55, %38, %cst_18 {dimension_numbers = #tpu.dot_dimension_numbers<[2], [1], [1], [2], [0, 0, 0, 1, 1, 2], [0], [0]>} : vector<8x8x8xbf16>, vector<8x8x8xbf16>, vector<8x8x8xf32> -> vector<8x8x8xf32>
    "tpu.trace_stop"() : () -> ()
    %57 = vector.extract_strided_slice %56 {offsets = [0, 0, 0], sizes = [2, 8, 8], strides = [1, 1, 1]} : vector<8x8x8xf32> to vector<2x8x8xf32>
    %58 = vector.shape_cast %57 : vector<2x8x8xf32> to vector<16x8xf32>
    %59 = vector.extract_strided_slice %56 {offsets = [2, 0, 0], sizes = [2, 8, 8], strides = [1, 1, 1]} : vector<8x8x8xf32> to vector<2x8x8xf32>
    %60 = vector.shape_cast %59 : vector<2x8x8xf32> to vector<16x8xf32>
    %61 = vector.extract_strided_slice %56 {offsets = [4, 0, 0], sizes = [2, 8, 8], strides = [1, 1, 1]} : vector<8x8x8xf32> to vector<2x8x8xf32>
    %62 = vector.shape_cast %61 : vector<2x8x8xf32> to vector<16x8xf32>
    %63 = vector.extract_strided_slice %56 {offsets = [6, 0, 0], sizes = [2, 8, 8], strides = [1, 1, 1]} : vector<8x8x8xf32> to vector<2x8x8xf32>
    %64 = vector.shape_cast %63 : vector<2x8x8xf32> to vector<16x8xf32>
    %65 = tpu.concatenate %58, %60, %62, %64 in 1 : vector<16x8xf32>, vector<16x8xf32>, vector<16x8xf32>, vector<16x8xf32> -> vector<16x32xf32>
    %66 = arith.truncf %65 : vector<16x32xf32> to vector<16x32xbf16>
    %c0_19 = arith.constant 0 : index
    %c0_20 = arith.constant 0 : index
    %67 = vector.load %arg5[%c0_19, %c0_20] : memref<32x32xbf16, #tpu.memory_space<vmem>>, vector<32x32xbf16>
    %cst_21 = arith.constant dense<0.000000e+00> : vector<16x32xf32>
    %68 = tpu.matmul %66, %67, %cst_21 {dimension_numbers = #tpu.dot_dimension_numbers<[1], [0], [0], [1], [0, 0, 1, 1], [], []>} : vector<16x32xbf16>, vector<32x32xbf16>, vector<16x32xf32> -> vector<16x32xf32>
    %69 = arith.addf %68, %1 : vector<16x32xf32>
    %cst_22 = arith.constant dense<0.000000e+00> : vector<16xf32>
    %70 = vector.multi_reduction <add>, %69, %cst_22 [1] : vector<16x32xf32> to vector<16xf32>
    %71 = vector.shape_cast %70 : vector<16xf32> to vector<16x1xf32>
    %cst_23 = arith.constant 3.200000e+01 : f32
    %72 = vector.broadcast %cst_23 : f32 to vector<16x1xf32>
    %73 = arith.divf %71, %72 : vector<16x1xf32>
    %74 = vector.broadcast %73 : vector<16x1xf32> to vector<16x32xf32>
    %75 = arith.subf %69, %74 : vector<16x32xf32>
    %76 = arith.mulf %75, %75 : vector<16x32xf32>
    %cst_24 = arith.constant dense<0.000000e+00> : vector<16xf32>
    %77 = vector.multi_reduction <add>, %76, %cst_24 [1] : vector<16x32xf32> to vector<16xf32>
    %78 = vector.shape_cast %77 : vector<16xf32> to vector<16x1xf32>
    %cst_25 = arith.constant 3.200000e+01 : f32
    %79 = vector.broadcast %cst_25 : f32 to vector<16x1xf32>
    %80 = arith.divf %78, %79 : vector<16x1xf32>
    %81 = vector.broadcast %73 : vector<16x1xf32> to vector<16x32xf32>
    %82 = arith.subf %69, %81 : vector<16x32xf32>
    %cst_26 = arith.constant 9.99999997E-7 : f32
    %83 = vector.broadcast %cst_26 : f32 to vector<16x1xf32>
    %84 = arith.addf %80, %83 : vector<16x1xf32>
    %85 = math.rsqrt %84 : vector<16x1xf32>
    %86 = vector.broadcast %85 : vector<16x1xf32> to vector<16x32xf32>
    %87 = arith.mulf %82, %86 : vector<16x32xf32>
    %c0_27 = arith.constant 0 : index
    %c0_28 = arith.constant 0 : index
    %88 = vector.load %arg6[%c0_27, %c0_28] : memref<1x32xf32, #tpu.memory_space<vmem>>, vector<1x32xf32>
    %89 = vector.broadcast %88 : vector<1x32xf32> to vector<16x32xf32>
    %90 = arith.mulf %87, %89 : vector<16x32xf32>
    %c0_29 = arith.constant 0 : index
    %c0_30 = arith.constant 0 : index
    %91 = vector.load %arg7[%c0_29, %c0_30] : memref<1x32xf32, #tpu.memory_space<vmem>>, vector<1x32xf32>
    %92 = vector.broadcast %91 : vector<1x32xf32> to vector<16x32xf32>
    %93 = arith.addf %90, %92 : vector<16x32xf32>
    %94 = arith.truncf %93 : vector<16x32xf32> to vector<16x32xbf16>
    %c0_31 = arith.constant 0 : index
    %c0_32 = arith.constant 0 : index
    %95 = vector.load %arg8[%c0_31, %c0_32] : memref<32x64xbf16, #tpu.memory_space<vmem>>, vector<32x64xbf16>
    %cst_33 = arith.constant dense<0.000000e+00> : vector<16x64xf32>
    %96 = tpu.matmul %94, %95, %cst_33 {dimension_numbers = #tpu.dot_dimension_numbers<[1], [0], [0], [1], [0, 0, 1, 1], [], []>} : vector<16x32xbf16>, vector<32x64xbf16>, vector<16x64xf32> -> vector<16x64xf32>
    %c0_34 = arith.constant 0 : index
    %c0_35 = arith.constant 0 : index
    %97 = vector.load %arg9[%c0_34, %c0_35] : memref<1x64xf32, #tpu.memory_space<vmem>>, vector<1x64xf32>
    %98 = vector.broadcast %97 : vector<1x64xf32> to vector<16x64xf32>
    %99 = arith.addf %96, %98 : vector<16x64xf32>
    %cst_36 = arith.constant 0.000000e+00 : f32
    %100 = vector.broadcast %cst_36 : f32 to vector<16x64xf32>
    %101 = arith.maximumf %99, %100 : vector<16x64xf32>
    %102 = arith.truncf %101 : vector<16x64xf32> to vector<16x64xbf16>
    %c0_37 = arith.constant 0 : index
    %c0_38 = arith.constant 0 : index
    %103 = vector.load %arg10[%c0_37, %c0_38] : memref<64x32xbf16, #tpu.memory_space<vmem>>, vector<64x32xbf16>
    %cst_39 = arith.constant dense<0.000000e+00> : vector<16x32xf32>
    %104 = tpu.matmul %102, %103, %cst_39 {dimension_numbers = #tpu.dot_dimension_numbers<[1], [0], [0], [1], [0, 0, 1, 1], [], []>} : vector<16x64xbf16>, vector<64x32xbf16>, vector<16x32xf32> -> vector<16x32xf32>
    %c0_40 = arith.constant 0 : index
    %c0_41 = arith.constant 0 : index
    %105 = vector.load %arg11[%c0_40, %c0_41] : memref<1x32xf32, #tpu.memory_space<vmem>>, vector<1x32xf32>
    %106 = vector.broadcast %105 : vector<1x32xf32> to vector<16x32xf32>
    %107 = arith.addf %104, %106 : vector<16x32xf32>
    %108 = arith.addf %107, %93 : vector<16x32xf32>
    %cst_42 = arith.constant dense<0.000000e+00> : vector<16xf32>
    %109 = vector.multi_reduction <add>, %108, %cst_42 [1] : vector<16x32xf32> to vector<16xf32>
    %110 = vector.shape_cast %109 : vector<16xf32> to vector<16x1xf32>
    %cst_43 = arith.constant 3.200000e+01 : f32
    %111 = vector.broadcast %cst_43 : f32 to vector<16x1xf32>
    %112 = arith.divf %110, %111 : vector<16x1xf32>
    %113 = vector.broadcast %112 : vector<16x1xf32> to vector<16x32xf32>
    %114 = arith.subf %108, %113 : vector<16x32xf32>
    %115 = arith.mulf %114, %114 : vector<16x32xf32>
    %cst_44 = arith.constant dense<0.000000e+00> : vector<16xf32>
    %116 = vector.multi_reduction <add>, %115, %cst_44 [1] : vector<16x32xf32> to vector<16xf32>
    %117 = vector.shape_cast %116 : vector<16xf32> to vector<16x1xf32>
    %cst_45 = arith.constant 3.200000e+01 : f32
    %118 = vector.broadcast %cst_45 : f32 to vector<16x1xf32>
    %119 = arith.divf %117, %118 : vector<16x1xf32>
    %120 = vector.broadcast %112 : vector<16x1xf32> to vector<16x32xf32>
    %121 = arith.subf %108, %120 : vector<16x32xf32>
    %cst_46 = arith.constant 9.99999997E-7 : f32
    %122 = vector.broadcast %cst_46 : f32 to vector<16x1xf32>
    %123 = arith.addf %119, %122 : vector<16x1xf32>
    %124 = math.rsqrt %123 : vector<16x1xf32>
    %125 = vector.broadcast %124 : vector<16x1xf32> to vector<16x32xf32>
    %126 = arith.mulf %121, %125 : vector<16x32xf32>
    %c0_47 = arith.constant 0 : index
    %c0_48 = arith.constant 0 : index
    %127 = vector.load %arg12[%c0_47, %c0_48] : memref<1x32xf32, #tpu.memory_space<vmem>>, vector<1x32xf32>
    %128 = vector.broadcast %127 : vector<1x32xf32> to vector<16x32xf32>
    %129 = arith.mulf %126, %128 : vector<16x32xf32>
    %c0_49 = arith.constant 0 : index
    %c0_50 = arith.constant 0 : index
    %130 = vector.load %arg13[%c0_49, %c0_50] : memref<1x32xf32, #tpu.memory_space<vmem>>, vector<1x32xf32>
    %131 = vector.broadcast %130 : vector<1x32xf32> to vector<16x32xf32>
    %132 = arith.addf %129, %131 : vector<16x32xf32>
    %c0_51 = arith.constant 0 : index
    %c0_52 = arith.constant 0 : index
    %c0_53 = arith.constant 0 : index
    %133 = vector.load %arg14[%c0_51, %c0_52, %c0_53] : memref<1x16x32xf32, #tpu.memory_space<vmem>>, vector<1x16x32xf32>
    %134 = vector.shape_cast %133 : vector<1x16x32xf32> to vector<16x32xf32>
    %135 = vector.shape_cast %132 : vector<16x32xf32> to vector<1x16x32xf32>
    tpu.vector_store %arg14[%c0_51, %c0_52, %c0_53], %135 {strides = array<i32>} : memref<1x16x32xf32, #tpu.memory_space<vmem>>, vector<1x16x32xf32>,
    return
  }
  func.func @transform_0(%arg0: i32) -> (i32, i32, i32) {
    %c0_i32 = arith.constant 0 : i32
    %c0_i32_0 = arith.constant 0 : i32
    %c0_i32_1 = arith.constant 0 : i32
    return %arg0, %c0_i32, %c0_i32_0 : i32, i32, i32
  }
  func.func @transform_1(%arg0: i32) -> (i32, i32) {
    %c0_i32 = arith.constant 0 : i32
    %c0_i32_0 = arith.constant 0 : i32
    %c0_i32_1 = arith.constant 0 : i32
    return %c0_i32, %c0_i32_0 : i32, i32
  }
  func.func @transform_2(%arg0: i32) -> (i32, i32) {
    %c0_i32 = arith.constant 0 : i32
    %c0_i32_0 = arith.constant 0 : i32
    %c0_i32_1 = arith.constant 0 : i32
    return %c0_i32, %c0_i32_0 : i32, i32
  }
  func.func @transform_3(%arg0: i32) -> (i32, i32) {
    %c0_i32 = arith.constant 0 : i32
    %c0_i32_0 = arith.constant 0 : i32
    %c0_i32_1 = arith.constant 0 : i32
    return %c0_i32, %c0_i32_0 : i32, i32
  }
  func.func @transform_4(%arg0: i32) -> (i32, i32) {
    %c0_i32 = arith.constant 0 : i32
    %c0_i32_0 = arith.constant 0 : i32
    %c0_i32_1 = arith.constant 0 : i32
    return %c0_i32, %c0_i32_0 : i32, i32
  }
  func.func @transform_5(%arg0: i32) -> (i32, i32) {
    %c0_i32 = arith.constant 0 : i32
    %c0_i32_0 = arith.constant 0 : i32
    %c0_i32_1 = arith.constant 0 : i32
    return %c0_i32, %c0_i32_0 : i32, i32
  }
  func.func @transform_6(%arg0: i32) -> (i32, i32) {
    %c0_i32 = arith.constant 0 : i32
    %c0_i32_0 = arith.constant 0 : i32
    %c0_i32_1 = arith.constant 0 : i32
    return %c0_i32, %c0_i32_0 : i32, i32
  }
  func.func @transform_7(%arg0: i32) -> (i32, i32) {
    %c0_i32 = arith.constant 0 : i32
    %c0_i32_0 = arith.constant 0 : i32
    %c0_i32_1 = arith.constant 0 : i32
    return %c0_i32, %c0_i32_0 : i32, i32
  }
  func.func @transform_8(%arg0: i32) -> (i32, i32) {
    %c0_i32 = arith.constant 0 : i32
    %c0_i32_0 = arith.constant 0 : i32
    %c0_i32_1 = arith.constant 0 : i32
    return %c0_i32, %c0_i32_0 : i32, i32
  }
  func.func @transform_9(%arg0: i32) -> (i32, i32) {
    %c0_i32 = arith.constant 0 : i32
    %c0_i32_0 = arith.constant 0 : i32
    %c0_i32_1 = arith.constant 0 : i32
    return %c0_i32, %c0_i32_0 : i32, i32
  }
  func.func @transform_10(%arg0: i32) -> (i32, i32) {
    %c0_i32 = arith.constant 0 : i32
    %c0_i32_0 = arith.constant 0 : i32
    %c0_i32_1 = arith.constant 0 : i32
    return %c0_i32, %c0_i32_0 : i32, i32
  }
  func.func @transform_11(%arg0: i32) -> (i32, i32) {
    %c0_i32 = arith.constant 0 : i32
    %c0_i32_0 = arith.constant 0 : i32
    %c0_i32_1 = arith.constant 0 : i32
    return %c0_i32, %c0_i32_0 : i32, i32
  }
  func.func @transform_12(%arg0: i32) -> (i32, i32) {
    %c0_i32 = arith.constant 0 : i32
    %c0_i32_0 = arith.constant 0 : i32
    %c0_i32_1 = arith.constant 0 : i32
    return %c0_i32, %c0_i32_0 : i32, i32
  }
  func.func @transform_13(%arg0: i32) -> (i32, i32, i32) {
    %c0_i32 = arith.constant 0 : i32
    %c0_i32_0 = arith.constant 0 : i32
    %c0_i32_1 = arith.constant 0 : i32
    return %arg0, %c0_i32, %c0_i32_0 : i32, i32, i32
  }
  func.func @transform_14(%arg0: i32) -> (i32, i32, i32, i32) {
    %c0_i32 = arith.constant 0 : i32
    %c0_i32_0 = arith.constant 0 : i32
    %c0_i32_1 = arith.constant 0 : i32
    %c0_i32_2 = arith.constant 0 : i32
    return %arg0, %c0_i32, %c0_i32_0, %c0_i32_1 : i32, i32, i32, i32
  }
}

</mosaic_0001>

<llo_original>
// kernel: tpu_custom_call.1
$region0: #{tpu_custom_call.1}
  #allocation0 [shape = 'u32[]', space=smem, size = 0x4, offset = 0x4, fixed_abs, tag = 'smem constant byte address 0x4 - core index']
  #allocation1 [shape = 'u32[144,128]{1,0:T(1,128)}', space=vmem, size = 0x12000, scoped, tag = 'internal scratch']
  %s0 = inlined_call_operand.vmem [shape: f32[2,16,32], index: 0, kind: input, shape index: {}]
  %s1 = inlined_call_operand.vmem [shape: bf16[32,32], index: 1, kind: input, shape index: {}]
  %s2 = inlined_call_operand.hbm [shape: bf16[32,32], index: 2, kind: input, shape index: {}]
  %s3 = inlined_call_operand.hbm [shape: bf16[32,32], index: 3, kind: input, shape index: {}]
  %s4 = inlined_call_operand.hbm [shape: bf16[32,32], index: 4, kind: input, shape index: {}]
  %s5 = inlined_call_operand.hbm [shape: f32[1,32], index: 5, kind: input, shape index: {}]
  %s6 = inlined_call_operand.hbm [shape: f32[1,32], index: 6, kind: input, shape index: {}]
  %s7 = inlined_call_operand.hbm [shape: bf16[32,64], index: 7, kind: input, shape index: {}]
  %s8 = inlined_call_operand.hbm [shape: f32[1,64], index: 8, kind: input, shape index: {}]
  %s9 = inlined_call_operand.vmem [shape: bf16[64,32], index: 9, kind: input, shape index: {}]
  %s10 = inlined_call_operand.vmem [shape: f32[1,32], index: 10, kind: input, shape index: {}]
  %s11 = inlined_call_operand.vmem [shape: f32[1,32], index: 11, kind: input, shape index: {}]
  %s12 = inlined_call_operand.vmem [shape: f32[1,32], index: 12, kind: input, shape index: {}]
  %s13 = inlined_call_operand.hbm [shape: f32[2,16,32], index: 13, kind: output, shape index: {0}]
  %s14 = inlined_call_operand.hbm [shape: f32[2,8,8,8], index: 14, kind: output, shape index: {1}]
  %15 = xla_tuple %s13, %s14
  %s16 = sld [smem:[#allocation0]]
  $region121: #{tpu_custom_call.1} parent=0
    _
  %s18 = ssub.s32 1, %s16
  %s19 = scalar_select 0, %s18, %s16
  $region1: #{tpu_custom_call.1} parent=0
    #allocation2 [shape = 'u8[8192]{0}', space=vmem, size = 0x2000, scoped, tag = 'input window, operand 2, single buffered']
    #allocation3 [shape = 's32[2]{0}', space=sflag, size = 0x8, scoped, tag = 'scoped memory for tpu_custom_call.1']
    #allocation4 [shape = 's32[2]{0}', space=sflag, size = 0x8, scoped, tag = 'scoped memory for tpu_custom_call.1']
    #allocation5 [shape = 'u8[8192]{0}', space=vmem, size = 0x2000, scoped, tag = 'input window, operand 3, single buffered']
    #allocation6 [shape = 's32[1]{0}', space=sflag, size = 0x4, scoped, tag = 'scoped memory for tpu_custom_call.1']
    #allocation7 [shape = 'u8[8192]{0}', space=vmem, size = 0x2000, scoped, tag = 'input window, operand 4, single buffered']
    #allocation8 [shape = 'u8[512]{0}', space=vmem, size = 0x400, scoped, tag = 'input window, operand 5, single buffered']
    #allocation9 [shape = 's32[1]{0}', space=sflag, size = 0x4, scoped, tag = 'scoped memory for tpu_custom_call.1']
    #allocation10 [shape = 'u8[512]{0}', space=vmem, size = 0x400, scoped, tag = 'input window, operand 6, single buffered']
    #allocation11 [shape = 'u8[8192]{0}', space=vmem, size = 0x2000, scoped, tag = 'input window, operand 7, single buffered']
    #allocation12 [shape = 's32[1]{0}', space=sflag, size = 0x4, scoped, tag = 'scoped memory for tpu_custom_call.1']
    #allocation13 [shape = 'u8[512]{0}', space=vmem, size = 0x400, scoped, tag = 'input window, operand 8, single buffered']
    #allocation14 [shape = 'u8[16384]{0}', space=vmem, size = 0x4000, scoped, tag = 'output window, operand 0']
    #allocation15 [shape = 'u8[65536]{0}', space=vmem, size = 0x10000, scoped, tag = 'output window, operand 1']
    #allocation16 [shape = 's32[2]{0}', space=sflag, size = 0x8, scoped, tag = 'scoped memory for tpu_custom_call.1']
    %20 = vsyncpa [#allocation3], 0
    %21 = vsyncpa [#allocation6], 0
    %22 = vsyncpa [#allocation9], 0
    %23 = vsyncpa [#allocation12], 0
    %24 = vsyncpa [#allocation4], 0
    %s25 = scalar_lea.sflag [#allocation4], 1
    %26 = vsyncpa %s25, 0
    %27 = vsyncpa [#allocation16], 0
    %s28 = scalar_lea.sflag [#allocation16], 1
    %29 = vsyncpa %s28, 0
    loop: start=0, step=1, limit=4
    $region2: #{tpu_custom_call.1} parent=1 // loop_pre_header
      _
    $region3: #{tpu_custom_call.1} parent=1 // loop_header
      %s31 = sphi 0, %s35
      %p32 = scmp.ge.s32.totalorder %s31, 4
      %s41 = sphi 0, %s43
      %s44 = sphi 0, %s41
      %s45 = sphi 0, %s44
      %s61 = sphi 0, %s45
      %s65 = sphi 0, %s65
      %s67 = sphi 0, %s65
      %s68 = sphi 0, %s67
      %s82 = sphi 0, %s68
      %s86 = sphi 0, %s86
      %s88 = sphi 0, %s86
      %s89 = sphi 0, %s88
      %s103 = sphi 0, %s89
      %s107 = sphi 0, %s107
      %s109 = sphi 0, %s107
      %s110 = sphi 0, %s109
      %s124 = sphi 0, %s110
      %s128 = sphi 0, %s128
      %s130 = sphi 0, %s128
      %s131 = sphi 0, %s130
      %s145 = sphi 0, %s131
      %s149 = sphi 0, %s149
      %s151 = sphi 0, %s149
      %s152 = sphi 0, %s151
      %s166 = sphi 0, %s152
      %s170 = sphi 0, %s170
      %s172 = sphi 0, %s170
      %s173 = sphi 0, %s172
      %s187 = sphi 0, %s173
      %s191 = sphi 0, %s191
      %s193 = sphi 0, %s191
      %s194 = sphi 0, %s193
      %s208 = sphi 0, %s194
      %s212 = sphi 0, %s212
      %s214 = sphi 0, %s212
      %s215 = sphi 0, %s214
      %s229 = sphi 0, %s215
      %s233 = sphi 0, %s233
      %s235 = sphi 0, %s233
      %s236 = sphi 0, %s235
      %s250 = sphi 0, %s236
      %s254 = sphi 0, %s254
      %s256 = sphi 0, %s254
      %s257 = sphi 0, %s256
      %s271 = sphi 0, %s257
      %s275 = sphi 0, %s275
      %s277 = sphi 0, %s275
      %s278 = sphi 0, %s277
      %s292 = sphi 0, %s278
      %s296 = sphi 0, %s296
      %s298 = sphi 0, %s296
      %s299 = sphi 0, %s298
      %s313 = sphi 0, %s299
      %s319 = sphi 0, %s321
      %s322 = sphi 0, %s319
      %s323 = sphi 0, %s322
      %s339 = sphi 0, %s323
      %s345 = sphi 0, %s347
      %s348 = sphi 0, %s345
      %s349 = sphi 0, %s348
      %s365 = sphi 0, %s349
    $region4: #{tpu_custom_call.1} parent=1 // loop_header_branch
      %34 = sbr.rel (%p32) target = $region8
    $region5: #{tpu_custom_call.1} parent=1 // loop_body
      %s36 = ssub.s32 %s31, 1
      %s37 = ssub.s32 %s31, 2
      %s38 = sadd.s32 %s31, 1
      %s39 = ssub.s32 %s31, %s38
      %p40 = scmp.eq.s32.totalorder %s39, 0
      %s42 = sadd.s32 %s41, 1
      %s43 = scalar_select %p40, %s41, %s42
      %p46 = pneg %p40
      %p47 = scmp.eq.s32.totalorder %s31, 1
      %p48 = por %p46, %p47
      %p49 = scmp.ne.s32.totalorder %s41, %s44
      %p50 = scmp.eq.s32.totalorder %s31, 0
      %p51 = por %p49, %p50
      %p52 = scmp.ne.s32.totalorder %s41, %s44
      %p53 = scmp.eq.s32.totalorder %s36, 1
      %p54 = por %p52, %p53
      %p55 = scmp.ne.s32.totalorder %s44, %s45
      %p56 = scmp.eq.s32.totalorder %s36, 0
      %p57 = por %p55, %p56
      %p58 = scmp.ne.s32.totalorder %s44, %s45
      %p59 = scmp.eq.s32.totalorder %s37, 1
      %p60 = por %p58, %p59
      %p62 = scmp.ne.s32.totalorder %s45, %s61
      %p63 = scmp.eq.s32.totalorder %s37, 0
      %p64 = por %p62, %p63
      %s66 = sadd.s32 %s65, 1
      %p69 = scmp.eq.s32.totalorder %s31, 1
      %p70 = scmp.ne.s32.totalorder %s65, %s67
      %p71 = scmp.eq.s32.totalorder %s31, 0
      %p72 = por %p70, %p71
      %p73 = scmp.ne.s32.totalorder %s65, %s67
      %p74 = scmp.eq.s32.totalorder %s36, 1
      %p75 = por %p73, %p74
      %p76 = scmp.ne.s32.totalorder %s67, %s68
      %p77 = scmp.eq.s32.totalorder %s36, 0
      %p78 = por %p76, %p77
      %p79 = scmp.ne.s32.totalorder %s67, %s68
      %p80 = scmp.eq.s32.totalorder %s37, 1
      %p81 = por %p79, %p80
      %p83 = scmp.ne.s32.totalorder %s68, %s82
      %p84 = scmp.eq.s32.totalorder %s37, 0
      %p85 = por %p83, %p84
      %s87 = sadd.s32 %s86, 1
      %p90 = scmp.eq.s32.totalorder %s31, 1
      %p91 = scmp.ne.s32.totalorder %s86, %s88
      %p92 = scmp.eq.s32.totalorder %s31, 0
      %p93 = por %p91, %p92
      %p94 = scmp.ne.s32.totalorder %s86, %s88
      %p95 = scmp.eq.s32.totalorder %s36, 1
      %p96 = por %p94, %p95
      %p97 = scmp.ne.s32.totalorder %s88, %s89
      %p98 = scmp.eq.s32.totalorder %s36, 0
      %p99 = por %p97, %p98
      %p100 = scmp.ne.s32.totalorder %s88, %s89
      %p101 = scmp.eq.s32.totalorder %s37, 1
      %p102 = por %p100, %p101
      %p104 = scmp.ne.s32.totalorder %s89, %s103
      %p105 = scmp.eq.s32.totalorder %s37, 0
      %p106 = por %p104, %p105
      %s108 = sadd.s32 %s107, 1
      %p111 = scmp.eq.s32.totalorder %s31, 1
      %p112 = scmp.ne.s32.totalorder %s107, %s109
      %p113 = scmp.eq.s32.totalorder %s31, 0
      %p114 = por %p112, %p113
      %p115 = scmp.ne.s32.totalorder %s107, %s109
      %p116 = scmp.eq.s32.totalorder %s36, 1
      %p117 = por %p115, %p116
      %p118 = scmp.ne.s32.totalorder %s109, %s110
      %p119 = scmp.eq.s32.totalorder %s36, 0
      %p120 = por %p118, %p119
      %p121 = scmp.ne.s32.totalorder %s109, %s110
      %p122 = scmp.eq.s32.totalorder %s37, 1
      %p123 = por %p121, %p122
      %p125 = scmp.ne.s32.totalorder %s110, %s124
      %p126 = scmp.eq.s32.totalorder %s37, 0
      %p127 = por %p125, %p126
      %s129 = sadd.s32 %s128, 1
      %p132 = scmp.eq.s32.totalorder %s31, 1
      %p133 = scmp.ne.s32.totalorder %s128, %s130
      %p134 = scmp.eq.s32.totalorder %s31, 0
      %p135 = por %p133, %p134
      %p136 = scmp.ne.s32.totalorder %s128, %s130
      %p137 = scmp.eq.s32.totalorder %s36, 1
      %p138 = por %p136, %p137
      %p139 = scmp.ne.s32.totalorder %s130, %s131
      %p140 = scmp.eq.s32.totalorder %s36, 0
      %p141 = por %p139, %p140
      %p142 = scmp.ne.s32.totalorder %s130, %s131
      %p143 = scmp.eq.s32.totalorder %s37, 1
      %p144 = por %p142, %p143
      %p146 = scmp.ne.s32.totalorder %s131, %s145
      %p147 = scmp.eq.s32.totalorder %s37, 0
      %p148 = por %p146, %p147
      %s150 = sadd.s32 %s149, 1
      %p153 = scmp.eq.s32.totalorder %s31, 1
      %p154 = scmp.ne.s32.totalorder %s149, %s151
      %p155 = scmp.eq.s32.totalorder %s31, 0
      %p156 = por %p154, %p155
      %p157 = scmp.ne.s32.totalorder %s149, %s151
      %p158 = scmp.eq.s32.totalorder %s36, 1
      %p159 = por %p157, %p158
      %p160 = scmp.ne.s32.totalorder %s151, %s152
      %p161 = scmp.eq.s32.totalorder %s36, 0
      %p162 = por %p160, %p161
      %p163 = scmp.ne.s32.totalorder %s151, %s152
      %p164 = scmp.eq.s32.totalorder %s37, 1
      %p165 = por %p163, %p164
      %p167 = scmp.ne.s32.totalorder %s152, %s166
      %p168 = scmp.eq.s32.totalorder %s37, 0
      %p169 = por %p167, %p168
      %s171 = sadd.s32 %s170, 1
      %p174 = scmp.eq.s32.totalorder %s31, 1
      %p175 = scmp.ne.s32.totalorder %s170, %s172
      %p176 = scmp.eq.s32.totalorder %s31, 0
      %p177 = por %p175, %p176
      %p178 = scmp.ne.s32.totalorder %s170, %s172
      %p179 = scmp.eq.s32.totalorder %s36, 1
      %p180 = por %p178, %p179
      %p181 = scmp.ne.s32.totalorder %s172, %s173
      %p182 = scmp.eq.s32.totalorder %s36, 0
      %p183 = por %p181, %p182
      %p184 = scmp.ne.s32.totalorder %s172, %s173
      %p185 = scmp.eq.s32.totalorder %s37, 1
      %p186 = por %p184, %p185
      %p188 = scmp.ne.s32.totalorder %s173, %s187
      %p189 = scmp.eq.s32.totalorder %s37, 0
      %p190 = por %p188, %p189
      %s192 = sadd.s32 %s191, 1
      %p195 = scmp.eq.s32.totalorder %s31, 1
      %p196 = scmp.ne.s32.totalorder %s191, %s193
      %p197 = scmp.eq.s32.totalorder %s31, 0
      %p198 = por %p196, %p197
      %p199 = scmp.ne.s32.totalorder %s191, %s193
      %p200 = scmp.eq.s32.totalorder %s36, 1
      %p201 = por %p199, %p200
      %p202 = scmp.ne.s32.totalorder %s193, %s194
      %p203 = scmp.eq.s32.totalorder %s36, 0
      %p204 = por %p202, %p203
      %p205 = scmp.ne.s32.totalorder %s193, %s194
      %p206 = scmp.eq.s32.totalorder %s37, 1
      %p207 = por %p205, %p206
      %p209 = scmp.ne.s32.totalorder %s194, %s208
      %p210 = scmp.eq.s32.totalorder %s37, 0
      %p211 = por %p209, %p210
      %s213 = sadd.s32 %s212, 1
      %p216 = scmp.eq.s32.totalorder %s31, 1
      %p217 = scmp.ne.s32.totalorder %s212, %s214
      %p218 = scmp.eq.s32.totalorder %s31, 0
      %p219 = por %p217, %p218
      %p220 = scmp.ne.s32.totalorder %s212, %s214
      %p221 = scmp.eq.s32.totalorder %s36, 1
      %p222 = por %p220, %p221
      %p223 = scmp.ne.s32.totalorder %s214, %s215
      %p224 = scmp.eq.s32.totalorder %s36, 0
      %p225 = por %p223, %p224
      %p226 = scmp.ne.s32.totalorder %s214, %s215
      %p227 = scmp.eq.s32.totalorder %s37, 1
      %p228 = por %p226, %p227
      %p230 = scmp.ne.s32.totalorder %s215, %s229
      %p231 = scmp.eq.s32.totalorder %s37, 0
      %p232 = por %p230, %p231
      %s234 = sadd.s32 %s233, 1
      %p237 = scmp.eq.s32.totalorder %s31, 1
      %p238 = scmp.ne.s32.totalorder %s233, %s235
      %p239 = scmp.eq.s32.totalorder %s31, 0
      %p240 = por %p238, %p239
      %p241 = scmp.ne.s32.totalorder %s233, %s235
      %p242 = scmp.eq.s32.totalorder %s36, 1
      %p243 = por %p241, %p242
      %p244 = scmp.ne.s32.totalorder %s235, %s236
      %p245 = scmp.eq.s32.totalorder %s36, 0
      %p246 = por %p244, %p245
      %p247 = scmp.ne.s32.totalorder %s235, %s236
      %p248 = scmp.eq.s32.totalorder %s37, 1
      %p249 = por %p247, %p248
      %p251 = scmp.ne.s32.totalorder %s236, %s250
      %p252 = scmp.eq.s32.totalorder %s37, 0
      %p253 = por %p251, %p252
      %s255 = sadd.s32 %s254, 1
      %p258 = scmp.eq.s32.totalorder %s31, 1
      %p259 = scmp.ne.s32.totalorder %s254, %s256
      %p260 = scmp.eq.s32.totalorder %s31, 0
      %p261 = por %p259, %p260
      %p262 = scmp.ne.s32.totalorder %s254, %s256
      %p263 = scmp.eq.s32.totalorder %s36, 1
      %p264 = por %p262, %p263
      %p265 = scmp.ne.s32.totalorder %s256, %s257
      %p266 = scmp.eq.s32.totalorder %s36, 0
      %p267 = por %p265, %p266
      %p268 = scmp.ne.s32.totalorder %s256, %s257
      %p269 = scmp.eq.s32.totalorder %s37, 1
      %p270 = por %p268, %p269
      %p272 = scmp.ne.s32.totalorder %s257, %s271
      %p273 = scmp.eq.s32.totalorder %s37, 0
      %p274 = por %p272, %p273
      %s276 = sadd.s32 %s275, 1
      %p279 = scmp.eq.s32.totalorder %s31, 1
      %p280 = scmp.ne.s32.totalorder %s275, %s277
      %p281 = scmp.eq.s32.totalorder %s31, 0
      %p282 = por %p280, %p281
      %p283 = scmp.ne.s32.totalorder %s275, %s277
      %p284 = scmp.eq.s32.totalorder %s36, 1
      %p285 = por %p283, %p284
      %p286 = scmp.ne.s32.totalorder %s277, %s278
      %p287 = scmp.eq.s32.totalorder %s36, 0
      %p288 = por %p286, %p287
      %p289 = scmp.ne.s32.totalorder %s277, %s278
      %p290 = scmp.eq.s32.totalorder %s37, 1
      %p291 = por %p289, %p290
      %p293 = scmp.ne.s32.totalorder %s278, %s292
      %p294 = scmp.eq.s32.totalorder %s37, 0
      %p295 = por %p293, %p294
      %s297 = sadd.s32 %s296, 1
      %p300 = scmp.eq.s32.totalorder %s31, 1
      %p301 = scmp.ne.s32.totalorder %s296, %s298
      %p302 = scmp.eq.s32.totalorder %s31, 0
      %p303 = por %p301, %p302
      %p304 = scmp.ne.s32.totalorder %s296, %s298
      %p305 = scmp.eq.s32.totalorder %s36, 1
      %p306 = por %p304, %p305
      %p307 = scmp.ne.s32.totalorder %s298, %s299
      %p308 = scmp.eq.s32.totalorder %s36, 0
      %p309 = por %p307, %p308
      %p310 = scmp.ne.s32.totalorder %s298, %s299
      %p311 = scmp.eq.s32.totalorder %s37, 1
      %p312 = por %p310, %p311
      %p314 = scmp.ne.s32.totalorder %s299, %s313
      %p315 = scmp.eq.s32.totalorder %s37, 0
      %p316 = por %p314, %p315
      %s317 = ssub.s32 %s31, %s38
      %p318 = scmp.eq.s32.totalorder %s317, 0
      %s320 = sadd.s32 %s319, 1
      %s321 = scalar_select %p318, %s319, %s320
      %p324 = pneg %p318
      %p325 = scmp.eq.s32.totalorder %s31, 1
      %p326 = por %p324, %p325
      %p327 = scmp.ne.s32.totalorder %s319, %s322
      %p328 = scmp.eq.s32.totalorder %s31, 0
      %p329 = por %p327, %p328
      %p330 = scmp.ne.s32.totalorder %s319, %s322
      %p331 = scmp.eq.s32.totalorder %s36, 1
      %p332 = por %p330, %p331
      %p333 = scmp.ne.s32.totalorder %s322, %s323
      %p334 = scmp.eq.s32.totalorder %s36, 0
      %p335 = por %p333, %p334
      %p336 = scmp.ne.s32.totalorder %s322, %s323
      %p337 = scmp.eq.s32.totalorder %s37, 1
      %p338 = por %p336, %p337
      %p340 = scmp.ne.s32.totalorder %s323, %s339
      %p341 = scmp.eq.s32.totalorder %s37, 0
      %p342 = por %p340, %p341
      %s343 = ssub.s32 %s31, %s38
      %p344 = scmp.eq.s32.totalorder %s343, 0
      %s346 = sadd.s32 %s345, 1
      %s347 = scalar_select %p344, %s345, %s346
      %p350 = pneg %p344
      %p351 = scmp.eq.s32.totalorder %s31, 1
      %p352 = por %p350, %p351
      %p353 = scmp.ne.s32.totalorder %s345, %s348
      %p354 = scmp.eq.s32.totalorder %s31, 0
      %p355 = por %p353, %p354
      %p356 = scmp.ne.s32.totalorder %s345, %s348
      %p357 = scmp.eq.s32.totalorder %s36, 1
      %p358 = por %p356, %p357
      %p359 = scmp.ne.s32.totalorder %s348, %s349
      %p360 = scmp.eq.s32.totalorder %s36, 0
      %p361 = por %p359, %p360
      %p362 = scmp.ne.s32.totalorder %s348, %s349
      %p363 = scmp.eq.s32.totalorder %s37, 1
      %p364 = por %p362, %p363
      %p366 = scmp.ne.s32.totalorder %s349, %s365
      %p367 = scmp.eq.s32.totalorder %s37, 0
      %p368 = por %p366, %p367
      %p369 = scmp.le.s32.totalorder 1, %s31
      %p370 = scmp.lt.s32.totalorder %s31, 3
      %p371 = pnand %p369, %p370
      %p372 = pneg %p371
      // Predicated region
      $region9: #{tpu_custom_call.1} parent=5 // pred_check
        _
      $region10: #{tpu_custom_call.1} parent=5 // pred_check_branch
        %374 = sbr.rel (%p371) target = $region12
      $region11: #{tpu_custom_call.1} parent=5 // pred_region
        %s375 = ssub.s32 %s31, 1
        // Predicated region
        $region13: #{tpu_custom_call.1} parent=11 // pred_check
          %p376 = pneg %p78
        $region14: #{tpu_custom_call.1} parent=11 // pred_check_branch
          %378 = sbr.rel (%p376) target = $region16
        $region15: #{tpu_custom_call.1} parent=11 // pred_region
          _
        $region16: #{tpu_custom_call.1} parent=11 // pred_fallthru
          _
        // Predicated region
        $region17: #{tpu_custom_call.1} parent=11 // pred_check
          %p379 = pneg %p99
        $region18: #{tpu_custom_call.1} parent=11 // pred_check_branch
          %381 = sbr.rel (%p379) target = $region20
        $region19: #{tpu_custom_call.1} parent=11 // pred_region
          %s383 = ssub.s32 256, 256
          %384 = vsyncadd [#allocation3], %s383
          %s385 = sshll.u32 [#allocation2], 4
          %s386 = int_to_ptr.vmem [resolvable:$true] %s385
          %391 = dma.hbm_to_vmem [thread:$0]  %s2, 256, %s386, [#allocation3], 64, 64, 4
        $region20: #{tpu_custom_call.1} parent=11 // pred_fallthru
          _
        // Predicated region
        $region21: #{tpu_custom_call.1} parent=11 // pred_check
          %p392 = pneg %p120
        $region22: #{tpu_custom_call.1} parent=11 // pred_check_branch
          %394 = sbr.rel (%p392) target = $region24
        $region23: #{tpu_custom_call.1} parent=11 // pred_region
          %s396 = ssub.s32 256, 256
          %397 = vsyncadd [#allocation6], %s396
          %s398 = sshll.u32 [#allocation5], 4
          %s399 = int_to_ptr.vmem [resolvable:$true] %s398
          %404 = dma.hbm_to_vmem [thread:$0]  %s3, 256, %s399, [#allocation6], 64, 64, 4
        $region24: #{tpu_custom_call.1} parent=11 // pred_fallthru
          _
        // Predicated region
        $region25: #{tpu_custom_call.1} parent=11 // pred_check
          %p405 = pneg %p141
        $region26: #{tpu_custom_call.1} parent=11 // pred_check_branch
          %407 = sbr.rel (%p405) target = $region28
        $region27: #{tpu_custom_call.1} parent=11 // pred_region
          %s409 = ssub.s32 256, 256
          %410 = vsyncadd [#allocation6], %s409
          %s411 = sshll.u32 [#allocation7], 4
          %s412 = int_to_ptr.vmem [resolvable:$true] %s411
          %417 = dma.hbm_to_vmem [thread:$0]  %s4, 256, %s412, [#allocation6], 64, 64, 4
        $region28: #{tpu_custom_call.1} parent=11 // pred_fallthru
          _
        // Predicated region
        $region29: #{tpu_custom_call.1} parent=11 // pred_check
          %p418 = pneg %p162
        $region30: #{tpu_custom_call.1} parent=11 // pred_check_branch
          %420 = sbr.rel (%p418) target = $region32
        $region31: #{tpu_custom_call.1} parent=11 // pred_region
          %s422 = ssub.s32 16, 16
          %423 = vsyncadd [#allocation9], %s422
          %s425 = sshll.u32 [#allocation8], 4
          %s426 = int_to_ptr.vmem [resolvable:$true] %s425
          %428 = dma.hbm_to_vmem [thread:$0]  %s5, 16, %s426, [#allocation9]
        $region32: #{tpu_custom_call.1} parent=11 // pred_fallthru
          _
        // Predicated region
        $region33: #{tpu_custom_call.1} parent=11 // pred_check
          %p429 = pneg %p183
        $region34: #{tpu_custom_call.1} parent=11 // pred_check_branch
          %431 = sbr.rel (%p429) target = $region36
        $region35: #{tpu_custom_call.1} parent=11 // pred_region
          %s433 = ssub.s32 16, 16
          %434 = vsyncadd [#allocation9], %s433
          %s436 = sshll.u32 [#allocation10], 4
          %s437 = int_to_ptr.vmem [resolvable:$true] %s436
          %439 = dma.hbm_to_vmem [thread:$0]  %s6, 16, %s437, [#allocation9]
        $region36: #{tpu_custom_call.1} parent=11 // pred_fallthru
          _
        // Predicated region
        $region37: #{tpu_custom_call.1} parent=11 // pred_check
          %p440 = pneg %p204
        $region38: #{tpu_custom_call.1} parent=11 // pred_check_branch
          %442 = sbr.rel (%p440) target = $region40
        $region39: #{tpu_custom_call.1} parent=11 // pred_region
          %s444 = ssub.s32 256, 256
          %445 = vsyncadd [#allocation12], %s444
          %s446 = sshll.u32 [#allocation11], 4
          %s447 = int_to_ptr.vmem [resolvable:$true] %s446
          %452 = dma.hbm_to_vmem [thread:$0]  %s7, 256, %s447, [#allocation12], 64, 64, 4
        $region40: #{tpu_custom_call.1} parent=11 // pred_fallthru
          _
        // Predicated region
        $region41: #{tpu_custom_call.1} parent=11 // pred_check
          %p453 = pneg %p225
        $region42: #{tpu_custom_call.1} parent=11 // pred_check_branch
          %455 = sbr.rel (%p453) target = $region44
        $region43: #{tpu_custom_call.1} parent=11 // pred_region
          %s457 = ssub.s32 16, 16
          %458 = vsyncadd [#allocation12], %s457
          %s460 = sshll.u32 [#allocation13], 4
          %s461 = int_to_ptr.vmem [resolvable:$true] %s460
          %463 = dma.hbm_to_vmem [thread:$0]  %s8, 16, %s461, [#allocation12]
        $region44: #{tpu_custom_call.1} parent=11 // pred_fallthru
          _
        // Predicated region
        $region45: #{tpu_custom_call.1} parent=11 // pred_check
          %p464 = pneg %p246
        $region46: #{tpu_custom_call.1} parent=11 // pred_check_branch
          %466 = sbr.rel (%p464) target = $region48
        $region47: #{tpu_custom_call.1} parent=11 // pred_region
          _
        $region48: #{tpu_custom_call.1} parent=11 // pred_fallthru
          _
        // Predicated region
        $region49: #{tpu_custom_call.1} parent=11 // pred_check
          %p467 = pneg %p267
        $region50: #{tpu_custom_call.1} parent=11 // pred_check_branch
          %469 = sbr.rel (%p467) target = $region52
        $region51: #{tpu_custom_call.1} parent=11 // pred_region
          _
        $region52: #{tpu_custom_call.1} parent=11 // pred_fallthru
          _
        // Predicated region
        $region53: #{tpu_custom_call.1} parent=11 // pred_check
          %p470 = pneg %p288
        $region54: #{tpu_custom_call.1} parent=11 // pred_check_branch
          %472 = sbr.rel (%p470) target = $region56
        $region55: #{tpu_custom_call.1} parent=11 // pred_region
          _
        $region56: #{tpu_custom_call.1} parent=11 // pred_fallthru
          _
        // Predicated region
        $region57: #{tpu_custom_call.1} parent=11 // pred_check
          %p473 = pneg %p309
        $region58: #{tpu_custom_call.1} parent=11 // pred_check_branch
          %475 = sbr.rel (%p473) target = $region60
        $region59: #{tpu_custom_call.1} parent=11 // pred_region
          _
        $region60: #{tpu_custom_call.1} parent=11 // pred_fallthru
          _
      $region12: #{tpu_custom_call.1} parent=5 // pred_fallthru
        _
      %p476 = scmp.lt.s32.totalorder %s31, 2
      // Predicated region
      $region61: #{tpu_custom_call.1} parent=5 // pred_check
        %p477 = pneg %p476
      $region62: #{tpu_custom_call.1} parent=5 // pred_check_branch
        %479 = sbr.rel (%p477) target = $region64
      $region63: #{tpu_custom_call.1} parent=5 // pred_region
        // Predicated region
        $region65: #{tpu_custom_call.1} parent=63 // pred_check
          %p480 = pneg %p51
        $region66: #{tpu_custom_call.1} parent=63 // pred_check_branch
          %482 = sbr.rel (%p480) target = $region68
        $region67: #{tpu_custom_call.1} parent=63 // pred_region
          %p483 = scmp.lt.s32.totalorder %s31, 1
          %s484 = scalar_select %p483, %s31, 1
          %s485 = smul.addr %s484, 2
          %s486 = smul.addr %s485, 8
          %s487 = scalar_lea.vmem %s0, %s486
        $region68: #{tpu_custom_call.1} parent=63 // pred_fallthru
          _
      $region64: #{tpu_custom_call.1} parent=5 // pred_fallthru
        _
      %p488 = scmp.le.s32.totalorder 1, %s31
      %p489 = scmp.lt.s32.totalorder %s31, 3
      %p490 = pnand %p488, %p489
      %p491 = pneg %p490
      // Predicated region
      $region69: #{tpu_custom_call.1} parent=5 // pred_check
        _
      $region70: #{tpu_custom_call.1} parent=5 // pred_check_branch
        %493 = sbr.rel (%p490) target = $region72
      $region71: #{tpu_custom_call.1} parent=5 // pred_region
        %s494 = ssub.s32 %s31, 1
        // Predicated region
        $region73: #{tpu_custom_call.1} parent=71 // pred_check
          %p495 = pneg %p99
        $region74: #{tpu_custom_call.1} parent=71 // pred_check_branch
          %497 = sbr.rel (%p495) target = $region76
        $region75: #{tpu_custom_call.1} parent=71 // pred_region
          %498 = dma.done [#allocation3], 256
        $region76: #{tpu_custom_call.1} parent=71 // pred_fallthru
          _
        // Predicated region
        $region77: #{tpu_custom_call.1} parent=71 // pred_check
          %p499 = pneg %p120
        $region78: #{tpu_custom_call.1} parent=71 // pred_check_branch
          %501 = sbr.rel (%p499) target = $region80
        $region79: #{tpu_custom_call.1} parent=71 // pred_region
          %502 = dma.done [#allocation6], 256
        $region80: #{tpu_custom_call.1} parent=71 // pred_fallthru
          _
        // Predicated region
        $region81: #{tpu_custom_call.1} parent=71 // pred_check
          %p503 = pneg %p141
        $region82: #{tpu_custom_call.1} parent=71 // pred_check_branch
          %505 = sbr.rel (%p503) target = $region84
        $region83: #{tpu_custom_call.1} parent=71 // pred_region
          %506 = dma.done [#allocation6], 256
        $region84: #{tpu_custom_call.1} parent=71 // pred_fallthru
          _
        // Predicated region
        $region85: #{tpu_custom_call.1} parent=71 // pred_check
          %p507 = pneg %p162
        $region86: #{tpu_custom_call.1} parent=71 // pred_check_branch
          %509 = sbr.rel (%p507) target = $region88
        $region87: #{tpu_custom_call.1} parent=71 // pred_region
          %510 = dma.done [#allocation9], 16
        $region88: #{tpu_custom_call.1} parent=71 // pred_fallthru
          _
        // Predicated region
        $region89: #{tpu_custom_call.1} parent=71 // pred_check
          %p511 = pneg %p183
        $region90: #{tpu_custom_call.1} parent=71 // pred_check_branch
          %513 = sbr.rel (%p511) target = $region92
        $region91: #{tpu_custom_call.1} parent=71 // pred_region
          %514 = dma.done [#allocation9], 16
        $region92: #{tpu_custom_call.1} parent=71 // pred_fallthru
          _
        // Predicated region
        $region93: #{tpu_custom_call.1} parent=71 // pred_check
          %p515 = pneg %p204
        $region94: #{tpu_custom_call.1} parent=71 // pred_check_branch
          %517 = sbr.rel (%p515) target = $region96
        $region95: #{tpu_custom_call.1} parent=71 // pred_region
          %518 = dma.done [#allocation12], 256
        $region96: #{tpu_custom_call.1} parent=71 // pred_fallthru
          _
        // Predicated region
        $region97: #{tpu_custom_call.1} parent=71 // pred_check
          %p519 = pneg %p225
        $region98: #{tpu_custom_call.1} parent=71 // pred_check_branch
          %521 = sbr.rel (%p519) target = $region100
        $region99: #{tpu_custom_call.1} parent=71 // pred_region
          %522 = dma.done [#allocation12], 16
        $region100: #{tpu_custom_call.1} parent=71 // pred_fallthru
          _
        %p523 = scmp.lt.s32.totalorder %s36, 1
        %s524 = scalar_select %p523, %s36, 1
        %s525 = smul.addr %s524, 2
        %s526 = smul.addr %s525, 8
        %s527 = scalar_lea.vmem %s0, %s526
        %p528 = pneg %p57
        %p529 = pneg %p54
        %p530 = pneg %p78
        %p531 = pneg %p75
        %p532 = pneg %p99
        %p533 = pneg %p96
        %p534 = pneg %p120
        %p535 = pneg %p117
        %p536 = pneg %p141
        %p537 = pneg %p138
        %p538 = pneg %p162
        %p539 = pneg %p159
        %p540 = pneg %p183
        %p541 = pneg %p180
        %p542 = pneg %p204
        %p543 = pneg %p201
        %p544 = pneg %p225
        %p545 = pneg %p222
        %p546 = pneg %p246
        %p547 = pneg %p243
        %p548 = pneg %p267
        %p549 = pneg %p264
        %p550 = pneg %p288
        %p551 = pneg %p285
        %p552 = pneg %p309
        %p553 = pneg %p306
        %p554 = pneg %p335
        %p555 = pneg %p332
        %s556 = sand.u32 %s322, 1
        %s557 = scalar_lea.sflag [#allocation4], %s556
        %s558 = sand.u32 %s322, 1
        %s559 = smul.addr %s558, 16
        %s560 = scalar_lea.vmem [#allocation14], %s559
        %p561 = pneg %p361
        %p562 = pneg %p358
        %s563 = sand.u32 %s348, 1
        %s564 = scalar_lea.sflag [#allocation16], %s563
        %s565 = sand.u32 %s348, 1
        %s566 = smul.addr %s565, 64
        %s567 = scalar_lea.vmem [#allocation15], %s566
        %p568 = scmp.lt.s32.totalorder %s36, 1
        %s569 = scalar_select %p568, %s36, 1
        %s570 = smul.addr %s569, 2
        %s571 = smul.addr %s570, 8
        %s572 = scalar_lea.vmem %s0, %s571
        %v574 = vld [vmem:[%s572] sm:$0xff]
        %v575 = vld [vmem:[%s572 + $0x8] sm:$0xff]
        %v576 = vpack.c.bf16 %v575, %v574
        %v577 = vld [vmem:[%s1] sm:$0xf]
        %v578 = vld [vmem:[%s1 + $0x4] sm:$0xf]
        %v579 = vld [vmem:[%s1 + $0x8] sm:$0xf]
        %v580 = vld [vmem:[%s1 + $0xc] sm:$0xf]
        %v585 = vunpack.c.l.b16 %v577
        %v586 = vunpack.c.l.b16 %v578
        %v587 = vunpack.c.l.b16 %v579
        %v588 = vunpack.c.l.b16 %v580
        %v589 = vpack.c.b16 %v586, %v585
        %v590 = vpack.c.b16 %v588, %v587
        %vm593 = vcmask 261120
        %v595 = vsel %vm593, %v576, 0
        %597 = vmatprep.subr.bf16.mxu0 0
        %598 = vmatpush1.bf16.msra.mxu0 0
        %599 = vmatprep.subr.bf16.mxu0 0
        %600 = vmatpush1.bf16.msra.mxu0 0
        %601 = vmatprep.subr.bf16.mxu0 0
        %602 = vmatpush1.bf16.msra.mxu0 0
        %603 = vmatprep.subr.bf16.mxu0 0
        %604 = vmatpush1.bf16.msra.mxu0 0
        %605 = vmatprep.subr.bf16.mxu0 0
        %606 = vmatpush1.bf16.msra.mxu0 0
        %607 = vmatprep.subr.bf16.mxu0 0
        %608 = vmatpush1.bf16.msra.mxu0 0
        %609 = vmatprep.subr.bf16.mxu0 0
        %610 = vmatpush1.bf16.msra.mxu0 %v590
        %611 = vmatprep.subr.bf16.mxu0 0
        %612 = vmatpush1.bf16.msra.mxu0 %v589
        %613 = vmatprep.subr.bf16.mxu0 0
        %614 = vmatpush2.bf16.msra.mxu0 0
        %615 = vmatprep.subr.bf16.mxu0 0
        %616 = vmatpush2.bf16.msra.mxu0 0
        %617 = vmatprep.subr.bf16.mxu0 0
        %618 = vmatpush2.bf16.msra.mxu0 0
        %619 = vmatprep.subr.bf16.mxu0 0
        %620 = vmatpush2.bf16.msra.mxu0 0
        %621 = vmatprep.subr.bf16.mxu0 0
        %622 = vmatpush2.bf16.msra.mxu0 0
        %623 = vmatprep.subr.bf16.mxu0 0
        %624 = vmatpush2.bf16.msra.mxu0 0
        %625 = vmatprep.subr.bf16.mxu0 0
        %626 = vmatpush2.bf16.msra.mxu0 0
        %627 = vmatprep.subr.bf16.mxu0 0
        %628 = vmatpush2.bf16.msra.mxu0 0
        %629 = vmatprep.mubr.bf16.mxu0 0
        %630 = vmatmul.mubr.bf16.gmra.mxu0 %v595
        %v631 = vpop.f32.mrf.mxu0
        %v632 = vadd.f32 0.0, %v631
        %v633 = vpop.f32.mrf.mxu0
        %v634 = vpop.f32.mrf.mxu0
        %v635 = vadd.f32 0.0, %v634
        %v636 = vpop.f32.mrf.mxu0
        %637 = vdwg.mxu0
        %v638 = vld [vmem:[#allocation2] sm:$0xf]
        %v639 = vld [vmem:[#allocation2 + $0x4] sm:$0xf]
        %v640 = vld [vmem:[#allocation2 + $0x8] sm:$0xf]
        %v641 = vld [vmem:[#allocation2 + $0xc] sm:$0xf]
        %v646 = vunpack.c.l.b16 %v638
        %v647 = vunpack.c.l.b16 %v639
        %v648 = vunpack.c.l.b16 %v640
        %v649 = vunpack.c.l.b16 %v641
        %v650 = vpack.c.b16 %v647, %v646
        %v651 = vpack.c.b16 %v649, %v648
        %654 = vmatprep.subr.bf16.mxu0 0
        %655 = vmatpush1.bf16.msra.mxu0 0
        %656 = vmatprep.subr.bf16.mxu0 0
        %657 = vmatpush1.bf16.msra.mxu0 0
        %658 = vmatprep.subr.bf16.mxu0 0
        %659 = vmatpush1.bf16.msra.mxu0 0
        %660 = vmatprep.subr.bf16.mxu0 0
        %661 = vmatpush1.bf16.msra.mxu0 0
        %662 = vmatprep.subr.bf16.mxu0 0
        %663 = vmatpush1.bf16.msra.mxu0 0
        %664 = vmatprep.subr.bf16.mxu0 0
        %665 = vmatpush1.bf16.msra.mxu0 0
        %666 = vmatprep.subr.bf16.mxu0 0
        %667 = vmatpush1.bf16.msra.mxu0 %v651
        %668 = vmatprep.subr.bf16.mxu0 0
        %669 = vmatpush1.bf16.msra.mxu0 %v650
        %670 = vmatprep.subr.bf16.mxu0 0
        %671 = vmatpush2.bf16.msra.mxu0 0
        %672 = vmatprep.subr.bf16.mxu0 0
        %673 = vmatpush2.bf16.msra.mxu0 0
        %674 = vmatprep.subr.bf16.mxu0 0
        %675 = vmatpush2.bf16.msra.mxu0 0
        %676 = vmatprep.subr.bf16.mxu0 0
        %677 = vmatpush2.bf16.msra.mxu0 0
        %678 = vmatprep.subr.bf16.mxu0 0
        %679 = vmatpush2.bf16.msra.mxu0 0
        %680 = vmatprep.subr.bf16.mxu0 0
        %681 = vmatpush2.bf16.msra.mxu0 0
        %682 = vmatprep.subr.bf16.mxu0 0
        %683 = vmatpush2.bf16.msra.mxu0 0
        %684 = vmatprep.subr.bf16.mxu0 0
        %685 = vmatpush2.bf16.msra.mxu0 0
        %686 = vmatprep.mubr.bf16.mxu0 0
        %687 = vmatmul.mubr.bf16.gmra.mxu0 %v595
        %v688 = vpop.f32.mrf.mxu0
        %v689 = vadd.f32 0.0, %v688
        %v690 = vpop.f32.mrf.mxu0
        %v691 = vpop.f32.mrf.mxu0
        %v692 = vadd.f32 0.0, %v691
        %v693 = vpop.f32.mrf.mxu0
        %694 = vdwg.mxu0
        %v695 = vld [vmem:[#allocation5] sm:$0xf]
        %v696 = vld [vmem:[#allocation5 + $0x4] sm:$0xf]
        %v697 = vld [vmem:[#allocation5 + $0x8] sm:$0xf]
        %v698 = vld [vmem:[#allocation5 + $0xc] sm:$0xf]
        %v703 = vunpack.c.l.b16 %v695
        %v704 = vunpack.c.l.b16 %v696
        %v705 = vunpack.c.l.b16 %v697
        %v706 = vunpack.c.l.b16 %v698
        %v707 = vpack.c.b16 %v704, %v703
        %v708 = vpack.c.b16 %v706, %v705
        %711 = vmatprep.subr.bf16.mxu0 0
        %712 = vmatpush1.bf16.msra.mxu0 0
        %713 = vmatprep.subr.bf16.mxu0 0
        %714 = vmatpush1.bf16.msra.mxu0 0
        %715 = vmatprep.subr.bf16.mxu0 0
        %716 = vmatpush1.bf16.msra.mxu0 0
        %717 = vmatprep.subr.bf16.mxu0 0
        %718 = vmatpush1.bf16.msra.mxu0 0
        %719 = vmatprep.subr.bf16.mxu0 0
        %720 = vmatpush1.bf16.msra.mxu0 0
        %721 = vmatprep.subr.bf16.mxu0 0
        %722 = vmatpush1.bf16.msra.mxu0 0
        %723 = vmatprep.subr.bf16.mxu0 0
        %724 = vmatpush1.bf16.msra.mxu0 %v708
        %725 = vmatprep.subr.bf16.mxu0 0
        %726 = vmatpush1.bf16.msra.mxu0 %v707
        %727 = vmatprep.subr.bf16.mxu0 0
        %728 = vmatpush2.bf16.msra.mxu0 0
        %729 = vmatprep.subr.bf16.mxu0 0
        %730 = vmatpush2.bf16.msra.mxu0 0
        %731 = vmatprep.subr.bf16.mxu0 0
        %732 = vmatpush2.bf16.msra.mxu0 0
        %733 = vmatprep.subr.bf16.mxu0 0
        %734 = vmatpush2.bf16.msra.mxu0 0
        %735 = vmatprep.subr.bf16.mxu0 0
        %736 = vmatpush2.bf16.msra.mxu0 0
        %737 = vmatprep.subr.bf16.mxu0 0
        %738 = vmatpush2.bf16.msra.mxu0 0
        %739 = vmatprep.subr.bf16.mxu0 0
        %740 = vmatpush2.bf16.msra.mxu0 0
        %741 = vmatprep.subr.bf16.mxu0 0
        %742 = vmatpush2.bf16.msra.mxu0 0
        %743 = vmatprep.mubr.bf16.mxu0 0
        %744 = vmatmul.mubr.bf16.gmra.mxu0 %v595
        %v745 = vpop.f32.mrf.mxu0
        %v746 = vadd.f32 0.0, %v745
        %v747 = vpop.f32.mrf.mxu0
        %v748 = vpop.f32.mrf.mxu0
        %v749 = vadd.f32 0.0, %v748
        %v750 = vpop.f32.mrf.mxu0
        %751 = vdwg.mxu0
        %754 = vrot.lane.b32.xlu0 %v632, 120
        %v755 = vpop.permute.xlu0 %754
        %756 = vrot.lane.b32.xlu0 %v635, 120
        %v757 = vpop.permute.xlu0 %756
        %760 = vrot.lane.b32.xlu0 %v632, 112
        %v761 = vpop.permute.xlu0 %760
        %762 = vrot.lane.b32.xlu0 %v635, 112
        %v763 = vpop.permute.xlu0 %762
        %766 = vrot.lane.b32.xlu0 %v632, 104
        %v767 = vpop.permute.xlu0 %766
        %768 = vrot.lane.b32.xlu0 %v635, 104
        %v769 = vpop.permute.xlu0 %768
        %v772 = vpack.c.bf16 %v632, %v632
        %v773 = vpack.c.bf16 %v635, %v635
        %v774 = vpack.c.bf16 %v755, %v755
        %v775 = vpack.c.bf16 %v757, %v757
        %v776 = vpack.c.bf16 %v761, %v761
        %v777 = vpack.c.bf16 %v763, %v763
        %v778 = vpack.c.bf16 %v767, %v767
        %v779 = vpack.c.bf16 %v769, %v769
        %782 = vrot.lane.b32.xlu0 %v689, 120
        %v783 = vpop.permute.xlu0 %782
        %784 = vrot.lane.b32.xlu0 %v692, 120
        %v785 = vpop.permute.xlu0 %784
        %788 = vrot.lane.b32.xlu0 %v689, 112
        %v789 = vpop.permute.xlu0 %788
        %790 = vrot.lane.b32.xlu0 %v692, 112
        %v791 = vpop.permute.xlu0 %790
        %794 = vrot.lane.b32.xlu0 %v689, 104
        %v795 = vpop.permute.xlu0 %794
        %796 = vrot.lane.b32.xlu0 %v692, 104
        %v797 = vpop.permute.xlu0 %796
        %v800 = vpack.c.bf16 %v689, %v689
        %v801 = vpack.c.bf16 %v692, %v692
        %v802 = vpack.c.bf16 %v783, %v783
        %v803 = vpack.c.bf16 %v785, %v785
        %v804 = vpack.c.bf16 %v789, %v789
        %v805 = vpack.c.bf16 %v791, %v791
        %v806 = vpack.c.bf16 %v795, %v795
        %v807 = vpack.c.bf16 %v797, %v797
        %810 = vrot.lane.b32.xlu0 %v746, 120
        %v811 = vpop.permute.xlu0 %810
        %812 = vrot.lane.b32.xlu0 %v749, 120
        %v813 = vpop.permute.xlu0 %812
        %816 = vrot.lane.b32.xlu0 %v746, 112
        %v817 = vpop.permute.xlu0 %816
        %818 = vrot.lane.b32.xlu0 %v749, 112
        %v819 = vpop.permute.xlu0 %818
        %822 = vrot.lane.b32.xlu0 %v746, 104
        %v823 = vpop.permute.xlu0 %822
        %824 = vrot.lane.b32.xlu0 %v749, 104
        %v825 = vpop.permute.xlu0 %824
        %v828 = vpack.c.bf16 %v746, %v746
        %v829 = vpack.c.bf16 %v749, %v749
        %v830 = vpack.c.bf16 %v811, %v811
        %v831 = vpack.c.bf16 %v813, %v813
        %v832 = vpack.c.bf16 %v817, %v817
        %v833 = vpack.c.bf16 %v819, %v819
        %v834 = vpack.c.bf16 %v823, %v823
        %v835 = vpack.c.bf16 %v825, %v825
        %vm836 = vcmask 64512
        %v838 = vsel %vm836, %v772, 0
        %v841 = vsel %vm836, %v800, 0
        %843 = vmatprep.subr.bf16.mxu0 0
        %844 = vmatpush1.bf16.xpose.msra.mxu0 0
        %845 = vmatprep.subr.bf16.mxu0 0
        %846 = vmatpush1.bf16.xpose.msra.mxu0 0
        %847 = vmatprep.subr.bf16.mxu0 0
        %848 = vmatpush1.bf16.xpose.msra.mxu0 0
        %849 = vmatprep.subr.bf16.mxu0 0
        %850 = vmatpush1.bf16.xpose.msra.mxu0 0
        %851 = vmatprep.subr.bf16.mxu0 0
        %852 = vmatpush1.bf16.xpose.msra.mxu0 0
        %853 = vmatprep.subr.bf16.mxu0 0
        %854 = vmatpush1.bf16.xpose.msra.mxu0 0
        %855 = vmatprep.subr.bf16.mxu0 0
        %856 = vmatpush1.bf16.xpose.msra.mxu0 0
        %857 = vmatprep.subr.bf16.mxu0 0
        %858 = vmatpush1.bf16.xpose.msra.mxu0 %v841
        %859 = vmatprep.subr.bf16.mxu0 0
        %860 = vmatpush2.bf16.xpose.msra.mxu0 0
        %861 = vmatprep.subr.bf16.mxu0 0
        %862 = vmatpush2.bf16.xpose.msra.mxu0 0
        %863 = vmatprep.subr.bf16.mxu0 0
        %864 = vmatpush2.bf16.xpose.msra.mxu0 0
        %865 = vmatprep.subr.bf16.mxu0 0
        %866 = vmatpush2.bf16.xpose.msra.mxu0 0
        %867 = vmatprep.subr.bf16.mxu0 0
        %868 = vmatpush2.bf16.xpose.msra.mxu0 0
        %869 = vmatprep.subr.bf16.mxu0 0
        %870 = vmatpush2.bf16.xpose.msra.mxu0 0
        %871 = vmatprep.subr.bf16.mxu0 0
        %872 = vmatpush2.bf16.xpose.msra.mxu0 0
        %873 = vmatprep.subr.bf16.mxu0 0
        %874 = vmatpush2.bf16.xpose.msra.mxu0 0
        %875 = vmatprep.mubr.bf16.mxu0 0
        %876 = vmatmul.mubr.bf16.gmra.mxu0 %v838
        %v877 = vpop.f32.mrf.mxu0
        %v878 = vadd.f32 0.0, %v877
        %v879 = vpop.f32.mrf.mxu0
        %v880 = vpop.f32.mrf.mxu0
        %v881 = vpop.f32.mrf.mxu0
        %882 = vdwg.mxu0
        %v884 = vsel %vm836, %v773, 0
        %v887 = vsel %vm836, %v801, 0
        %889 = vmatprep.subr.bf16.mxu0 0
        %890 = vmatpush1.bf16.xpose.msra.mxu0 0
        %891 = vmatprep.subr.bf16.mxu0 0
        %892 = vmatpush1.bf16.xpose.msra.mxu0 0
        %893 = vmatprep.subr.bf16.mxu0 0
        %894 = vmatpush1.bf16.xpose.msra.mxu0 0
        %895 = vmatprep.subr.bf16.mxu0 0
        %896 = vmatpush1.bf16.xpose.msra.mxu0 0
        %897 = vmatprep.subr.bf16.mxu0 0
        %898 = vmatpush1.bf16.xpose.msra.mxu0 0
        %899 = vmatprep.subr.bf16.mxu0 0
        %900 = vmatpush1.bf16.xpose.msra.mxu0 0
        %901 = vmatprep.subr.bf16.mxu0 0
        %902 = vmatpush1.bf16.xpose.msra.mxu0 0
        %903 = vmatprep.subr.bf16.mxu0 0
        %904 = vmatpush1.bf16.xpose.msra.mxu0 %v887
        %905 = vmatprep.subr.bf16.mxu0 0
        %906 = vmatpush2.bf16.xpose.msra.mxu0 0
        %907 = vmatprep.subr.bf16.mxu0 0
        %908 = vmatpush2.bf16.xpose.msra.mxu0 0
        %909 = vmatprep.subr.bf16.mxu0 0
        %910 = vmatpush2.bf16.xpose.msra.mxu0 0
        %911 = vmatprep.subr.bf16.mxu0 0
        %912 = vmatpush2.bf16.xpose.msra.mxu0 0
        %913 = vmatprep.subr.bf16.mxu0 0
        %914 = vmatpush2.bf16.xpose.msra.mxu0 0
        %915 = vmatprep.subr.bf16.mxu0 0
        %916 = vmatpush2.bf16.xpose.msra.mxu0 0
        %917 = vmatprep.subr.bf16.mxu0 0
        %918 = vmatpush2.bf16.xpose.msra.mxu0 0
        %919 = vmatprep.subr.bf16.mxu0 0
        %920 = vmatpush2.bf16.xpose.msra.mxu0 0
        %921 = vmatprep.mubr.bf16.mxu0 0
        %922 = vmatmul.mubr.bf16.gmra.mxu0 %v884
        %v923 = vpop.f32.mrf.mxu0
        %v924 = vadd.f32 0.0, %v923
        %v925 = vpop.f32.mrf.mxu0
        %v926 = vpop.f32.mrf.mxu0
        %v927 = vpop.f32.mrf.mxu0
        %928 = vdwg.mxu0
        %v930 = vsel %vm836, %v774, 0
        %v933 = vsel %vm836, %v802, 0
        %935 = vmatprep.subr.bf16.mxu0 0
        %936 = vmatpush1.bf16.xpose.msra.mxu0 0
        %937 = vmatprep.subr.bf16.mxu0 0
        %938 = vmatpush1.bf16.xpose.msra.mxu0 0
        %939 = vmatprep.subr.bf16.mxu0 0
        %940 = vmatpush1.bf16.xpose.msra.mxu0 0
        %941 = vmatprep.subr.bf16.mxu0 0
        %942 = vmatpush1.bf16.xpose.msra.mxu0 0
        %943 = vmatprep.subr.bf16.mxu0 0
        %944 = vmatpush1.bf16.xpose.msra.mxu0 0
        %945 = vmatprep.subr.bf16.mxu0 0
        %946 = vmatpush1.bf16.xpose.msra.mxu0 0
        %947 = vmatprep.subr.bf16.mxu0 0
        %948 = vmatpush1.bf16.xpose.msra.mxu0 0
        %949 = vmatprep.subr.bf16.mxu0 0
        %950 = vmatpush1.bf16.xpose.msra.mxu0 %v933
        %951 = vmatprep.subr.bf16.mxu0 0
        %952 = vmatpush2.bf16.xpose.msra.mxu0 0
        %953 = vmatprep.subr.bf16.mxu0 0
        %954 = vmatpush2.bf16.xpose.msra.mxu0 0
        %955 = vmatprep.subr.bf16.mxu0 0
        %956 = vmatpush2.bf16.xpose.msra.mxu0 0
        %957 = vmatprep.subr.bf16.mxu0 0
        %958 = vmatpush2.bf16.xpose.msra.mxu0 0
        %959 = vmatprep.subr.bf16.mxu0 0
        %960 = vmatpush2.bf16.xpose.msra.mxu0 0
        %961 = vmatprep.subr.bf16.mxu0 0
        %962 = vmatpush2.bf16.xpose.msra.mxu0 0
        %963 = vmatprep.subr.bf16.mxu0 0
        %964 = vmatpush2.bf16.xpose.msra.mxu0 0
        %965 = vmatprep.subr.bf16.mxu0 0
        %966 = vmatpush2.bf16.xpose.msra.mxu0 0
        %967 = vmatprep.mubr.bf16.mxu0 0
        %968 = vmatmul.mubr.bf16.gmra.mxu0 %v930
        %v969 = vpop.f32.mrf.mxu0
        %v970 = vadd.f32 0.0, %v969
        %v971 = vpop.f32.mrf.mxu0
        %v972 = vpop.f32.mrf.mxu0
        %v973 = vpop.f32.mrf.mxu0
        %974 = vdwg.mxu0
        %v976 = vsel %vm836, %v775, 0
        %v979 = vsel %vm836, %v803, 0
        %981 = vmatprep.subr.bf16.mxu0 0
        %982 = vmatpush1.bf16.xpose.msra.mxu0 0
        %983 = vmatprep.subr.bf16.mxu0 0
        %984 = vmatpush1.bf16.xpose.msra.mxu0 0
        %985 = vmatprep.subr.bf16.mxu0 0
        %986 = vmatpush1.bf16.xpose.msra.mxu0 0
        %987 = vmatprep.subr.bf16.mxu0 0
        %988 = vmatpush1.bf16.xpose.msra.mxu0 0
        %989 = vmatprep.subr.bf16.mxu0 0
        %990 = vmatpush1.bf16.xpose.msra.mxu0 0
        %991 = vmatprep.subr.bf16.mxu0 0
        %992 = vmatpush1.bf16.xpose.msra.mxu0 0
        %993 = vmatprep.subr.bf16.mxu0 0
        %994 = vmatpush1.bf16.xpose.msra.mxu0 0
        %995 = vmatprep.subr.bf16.mxu0 0
        %996 = vmatpush1.bf16.xpose.msra.mxu0 %v979
        %997 = vmatprep.subr.bf16.mxu0 0
        %998 = vmatpush2.bf16.xpose.msra.mxu0 0
        %999 = vmatprep.subr.bf16.mxu0 0
        %1000 = vmatpush2.bf16.xpose.msra.mxu0 0
        %1001 = vmatprep.subr.bf16.mxu0 0
        %1002 = vmatpush2.bf16.xpose.msra.mxu0 0
        %1003 = vmatprep.subr.bf16.mxu0 0
        %1004 = vmatpush2.bf16.xpose.msra.mxu0 0
        %1005 = vmatprep.subr.bf16.mxu0 0
        %1006 = vmatpush2.bf16.xpose.msra.mxu0 0
        %1007 = vmatprep.subr.bf16.mxu0 0
        %1008 = vmatpush2.bf16.xpose.msra.mxu0 0
        %1009 = vmatprep.subr.bf16.mxu0 0
        %1010 = vmatpush2.bf16.xpose.msra.mxu0 0
        %1011 = vmatprep.subr.bf16.mxu0 0
        %1012 = vmatpush2.bf16.xpose.msra.mxu0 0
        %1013 = vmatprep.mubr.bf16.mxu0 0
        %1014 = vmatmul.mubr.bf16.gmra.mxu0 %v976
        %v1015 = vpop.f32.mrf.mxu0
        %v1016 = vadd.f32 0.0, %v1015
        %v1017 = vpop.f32.mrf.mxu0
        %v1018 = vpop.f32.mrf.mxu0
        %v1019 = vpop.f32.mrf.mxu0
        %1020 = vdwg.mxu0
        %v1022 = vsel %vm836, %v776, 0
        %v1025 = vsel %vm836, %v804, 0
        %1027 = vmatprep.subr.bf16.mxu0 0
        %1028 = vmatpush1.bf16.xpose.msra.mxu0 0
        %1029 = vmatprep.subr.bf16.mxu0 0
        %1030 = vmatpush1.bf16.xpose.msra.mxu0 0
        %1031 = vmatprep.subr.bf16.mxu0 0
        %1032 = vmatpush1.bf16.xpose.msra.mxu0 0
        %1033 = vmatprep.subr.bf16.mxu0 0
        %1034 = vmatpush1.bf16.xpose.msra.mxu0 0
        %1035 = vmatprep.subr.bf16.mxu0 0
        %1036 = vmatpush1.bf16.xpose.msra.mxu0 0
        %1037 = vmatprep.subr.bf16.mxu0 0
        %1038 = vmatpush1.bf16.xpose.msra.mxu0 0
        %1039 = vmatprep.subr.bf16.mxu0 0
        %1040 = vmatpush1.bf16.xpose.msra.mxu0 0
        %1041 = vmatprep.subr.bf16.mxu0 0
        %1042 = vmatpush1.bf16.xpose.msra.mxu0 %v1025
        %1043 = vmatprep.subr.bf16.mxu0 0
        %1044 = vmatpush2.bf16.xpose.msra.mxu0 0
        %1045 = vmatprep.subr.bf16.mxu0 0
        %1046 = vmatpush2.bf16.xpose.msra.mxu0 0
        %1047 = vmatprep.subr.bf16.mxu0 0
        %1048 = vmatpush2.bf16.xpose.msra.mxu0 0
        %1049 = vmatprep.subr.bf16.mxu0 0
        %1050 = vmatpush2.bf16.xpose.msra.mxu0 0
        %1051 = vmatprep.subr.bf16.mxu0 0
        %1052 = vmatpush2.bf16.xpose.msra.mxu0 0
        %1053 = vmatprep.subr.bf16.mxu0 0
        %1054 = vmatpush2.bf16.xpose.msra.mxu0 0
        %1055 = vmatprep.subr.bf16.mxu0 0
        %1056 = vmatpush2.bf16.xpose.msra.mxu0 0
        %1057 = vmatprep.subr.bf16.mxu0 0
        %1058 = vmatpush2.bf16.xpose.msra.mxu0 0
        %1059 = vmatprep.mubr.bf16.mxu0 0
        %1060 = vmatmul.mubr.bf16.gmra.mxu0 %v1022
        %v1061 = vpop.f32.mrf.mxu0
        %v1062 = vadd.f32 0.0, %v1061
        %v1063 = vpop.f32.mrf.mxu0
        %v1064 = vpop.f32.mrf.mxu0
        %v1065 = vpop.f32.mrf.mxu0
        %1066 = vdwg.mxu0
        %v1068 = vsel %vm836, %v777, 0
        %v1071 = vsel %vm836, %v805, 0
        %1073 = vmatprep.subr.bf16.mxu0 0
        %1074 = vmatpush1.bf16.xpose.msra.mxu0 0
        %1075 = vmatprep.subr.bf16.mxu0 0
        %1076 = vmatpush1.bf16.xpose.msra.mxu0 0
        %1077 = vmatprep.subr.bf16.mxu0 0
        %1078 = vmatpush1.bf16.xpose.msra.mxu0 0
        %1079 = vmatprep.subr.bf16.mxu0 0
        %1080 = vmatpush1.bf16.xpose.msra.mxu0 0
        %1081 = vmatprep.subr.bf16.mxu0 0
        %1082 = vmatpush1.bf16.xpose.msra.mxu0 0
        %1083 = vmatprep.subr.bf16.mxu0 0
        %1084 = vmatpush1.bf16.xpose.msra.mxu0 0
        %1085 = vmatprep.subr.bf16.mxu0 0
        %1086 = vmatpush1.bf16.xpose.msra.mxu0 0
        %1087 = vmatprep.subr.bf16.mxu0 0
        %1088 = vmatpush1.bf16.xpose.msra.mxu0 %v1071
        %1089 = vmatprep.subr.bf16.mxu0 0
        %1090 = vmatpush2.bf16.xpose.msra.mxu0 0
        %1091 = vmatprep.subr.bf16.mxu0 0
        %1092 = vmatpush2.bf16.xpose.msra.mxu0 0
        %1093 = vmatprep.subr.bf16.mxu0 0
        %1094 = vmatpush2.bf16.xpose.msra.mxu0 0
        %1095 = vmatprep.subr.bf16.mxu0 0
        %1096 = vmatpush2.bf16.xpose.msra.mxu0 0
        %1097 = vmatprep.subr.bf16.mxu0 0
        %1098 = vmatpush2.bf16.xpose.msra.mxu0 0
        %1099 = vmatprep.subr.bf16.mxu0 0
        %1100 = vmatpush2.bf16.xpose.msra.mxu0 0
        %1101 = vmatprep.subr.bf16.mxu0 0
        %1102 = vmatpush2.bf16.xpose.msra.mxu0 0
        %1103 = vmatprep.subr.bf16.mxu0 0
        %1104 = vmatpush2.bf16.xpose.msra.mxu0 0
        %1105 = vmatprep.mubr.bf16.mxu0 0
        %1106 = vmatmul.mubr.bf16.gmra.mxu0 %v1068
        %v1107 = vpop.f32.mrf.mxu0
        %v1108 = vadd.f32 0.0, %v1107
        %v1109 = vpop.f32.mrf.mxu0
        %v1110 = vpop.f32.mrf.mxu0
        %v1111 = vpop.f32.mrf.mxu0
        %1112 = vdwg.mxu0
        %v1114 = vsel %vm836, %v778, 0
        %v1117 = vsel %vm836, %v806, 0
        %1119 = vmatprep.subr.bf16.mxu0 0
        %1120 = vmatpush1.bf16.xpose.msra.mxu0 0
        %1121 = vmatprep.subr.bf16.mxu0 0
        %1122 = vmatpush1.bf16.xpose.msra.mxu0 0
        %1123 = vmatprep.subr.bf16.mxu0 0
        %1124 = vmatpush1.bf16.xpose.msra.mxu0 0
        %1125 = vmatprep.subr.bf16.mxu0 0
        %1126 = vmatpush1.bf16.xpose.msra.mxu0 0
        %1127 = vmatprep.subr.bf16.mxu0 0
        %1128 = vmatpush1.bf16.xpose.msra.mxu0 0
        %1129 = vmatprep.subr.bf16.mxu0 0
        %1130 = vmatpush1.bf16.xpose.msra.mxu0 0
        %1131 = vmatprep.subr.bf16.mxu0 0
        %1132 = vmatpush1.bf16.xpose.msra.mxu0 0
        %1133 = vmatprep.subr.bf16.mxu0 0
        %1134 = vmatpush1.bf16.xpose.msra.mxu0 %v1117
        %1135 = vmatprep.subr.bf16.mxu0 0
        %1136 = vmatpush2.bf16.xpose.msra.mxu0 0
        %1137 = vmatprep.subr.bf16.mxu0 0
        %1138 = vmatpush2.bf16.xpose.msra.mxu0 0
        %1139 = vmatprep.subr.bf16.mxu0 0
        %1140 = vmatpush2.bf16.xpose.msra.mxu0 0
        %1141 = vmatprep.subr.bf16.mxu0 0
        %1142 = vmatpush2.bf16.xpose.msra.mxu0 0
        %1143 = vmatprep.subr.bf16.mxu0 0
        %1144 = vmatpush2.bf16.xpose.msra.mxu0 0
        %1145 = vmatprep.subr.bf16.mxu0 0
        %1146 = vmatpush2.bf16.xpose.msra.mxu0 0
        %1147 = vmatprep.subr.bf16.mxu0 0
        %1148 = vmatpush2.bf16.xpose.msra.mxu0 0
        %1149 = vmatprep.subr.bf16.mxu0 0
        %1150 = vmatpush2.bf16.xpose.msra.mxu0 0
        %1151 = vmatprep.mubr.bf16.mxu0 0
        %1152 = vmatmul.mubr.bf16.gmra.mxu0 %v1114
        %v1153 = vpop.f32.mrf.mxu0
        %v1154 = vadd.f32 0.0, %v1153
        %v1155 = vpop.f32.mrf.mxu0
        %v1156 = vpop.f32.mrf.mxu0
        %v1157 = vpop.f32.mrf.mxu0
        %1158 = vdwg.mxu0
        %v1160 = vsel %vm836, %v779, 0
        %v1163 = vsel %vm836, %v807, 0
        %1165 = vmatprep.subr.bf16.mxu0 0
        %1166 = vmatpush1.bf16.xpose.msra.mxu0 0
        %1167 = vmatprep.subr.bf16.mxu0 0
        %1168 = vmatpush1.bf16.xpose.msra.mxu0 0
        %1169 = vmatprep.subr.bf16.mxu0 0
        %1170 = vmatpush1.bf16.xpose.msra.mxu0 0
        %1171 = vmatprep.subr.bf16.mxu0 0
        %1172 = vmatpush1.bf16.xpose.msra.mxu0 0
        %1173 = vmatprep.subr.bf16.mxu0 0
        %1174 = vmatpush1.bf16.xpose.msra.mxu0 0
        %1175 = vmatprep.subr.bf16.mxu0 0
        %1176 = vmatpush1.bf16.xpose.msra.mxu0 0
        %1177 = vmatprep.subr.bf16.mxu0 0
        %1178 = vmatpush1.bf16.xpose.msra.mxu0 0
        %1179 = vmatprep.subr.bf16.mxu0 0
        %1180 = vmatpush1.bf16.xpose.msra.mxu0 %v1163
        %1181 = vmatprep.subr.bf16.mxu0 0
        %1182 = vmatpush2.bf16.xpose.msra.mxu0 0
        %1183 = vmatprep.subr.bf16.mxu0 0
        %1184 = vmatpush2.bf16.xpose.msra.mxu0 0
        %1185 = vmatprep.subr.bf16.mxu0 0
        %1186 = vmatpush2.bf16.xpose.msra.mxu0 0
        %1187 = vmatprep.subr.bf16.mxu0 0
        %1188 = vmatpush2.bf16.xpose.msra.mxu0 0
        %1189 = vmatprep.subr.bf16.mxu0 0
        %1190 = vmatpush2.bf16.xpose.msra.mxu0 0
        %1191 = vmatprep.subr.bf16.mxu0 0
        %1192 = vmatpush2.bf16.xpose.msra.mxu0 0
        %1193 = vmatprep.subr.bf16.mxu0 0
        %1194 = vmatpush2.bf16.xpose.msra.mxu0 0
        %1195 = vmatprep.subr.bf16.mxu0 0
        %1196 = vmatpush2.bf16.xpose.msra.mxu0 0
        %1197 = vmatprep.mubr.bf16.mxu0 0
        %1198 = vmatmul.mubr.bf16.gmra.mxu0 %v1160
        %v1199 = vpop.f32.mrf.mxu0
        %v1200 = vadd.f32 0.0, %v1199
        %v1201 = vpop.f32.mrf.mxu0
        %v1202 = vpop.f32.mrf.mxu0
        %v1203 = vpop.f32.mrf.mxu0
        %1204 = vdwg.mxu0
        %v1205 = vmul.f32 %v878, 0.35355338
        %v1206 = vmul.f32 %v924, 0.35355338
        %v1207 = vmul.f32 %v970, 0.35355338
        %v1208 = vmul.f32 %v1016, 0.35355338
        %v1209 = vmul.f32 %v1062, 0.35355338
        %v1210 = vmul.f32 %v1108, 0.35355338
        %v1211 = vmul.f32 %v1154, 0.35355338
        %v1212 = vmul.f32 %v1200, 0.35355338
        %v1213 = vsel %vm836, %v1205, -inf
        %1214 = vmax.xlane.f32.xlu0 %v1213
        %v1215 = vpop.xlane.xlu0 %1214
        %v1216 = vsel %vm836, %v1206, -inf
        %1217 = vmax.xlane.f32.xlu0 %v1216
        %v1218 = vpop.xlane.xlu0 %1217
        %v1219 = vsel %vm836, %v1207, -inf
        %1220 = vmax.xlane.f32.xlu0 %v1219
        %v1221 = vpop.xlane.xlu0 %1220
        %v1222 = vsel %vm836, %v1208, -inf
        %1223 = vmax.xlane.f32.xlu0 %v1222
        %v1224 = vpop.xlane.xlu0 %1223
        %v1225 = vsel %vm836, %v1209, -inf
        %1226 = vmax.xlane.f32.xlu0 %v1225
        %v1227 = vpop.xlane.xlu0 %1226
        %v1228 = vsel %vm836, %v1210, -inf
        %1229 = vmax.xlane.f32.xlu0 %v1228
        %v1230 = vpop.xlane.xlu0 %1229
        %v1231 = vsel %vm836, %v1211, -inf
        %1232 = vmax.xlane.f32.xlu0 %v1231
        %v1233 = vpop.xlane.xlu0 %1232
        %v1234 = vsel %vm836, %v1212, -inf
        %1235 = vmax.xlane.f32.xlu0 %v1234
        %v1236 = vpop.xlane.xlu0 %1235
        %v1237 = vsub.f32 %v1205, %v1215
        %v1238 = vsub.f32 %v1206, %v1218
        %v1239 = vsub.f32 %v1207, %v1221
        %v1240 = vsub.f32 %v1208, %v1224
        %v1241 = vsub.f32 %v1209, %v1227
        %v1242 = vsub.f32 %v1210, %v1230
        %v1243 = vsub.f32 %v1211, %v1233
        %v1244 = vsub.f32 %v1212, %v1236
        %v1245 = vmul.f32 %v1237, 1.442695
        %v1246 = vpow.pop %v1245
        %v1247 = vmul.f32 %v1238, 1.442695
        %v1248 = vpow.pop %v1247
        %v1249 = vmul.f32 %v1239, 1.442695
        %v1250 = vpow.pop %v1249
        %v1251 = vmul.f32 %v1240, 1.442695
        %v1252 = vpow.pop %v1251
        %v1253 = vmul.f32 %v1241, 1.442695
        %v1254 = vpow.pop %v1253
        %v1255 = vmul.f32 %v1242, 1.442695
        %v1256 = vpow.pop %v1255
        %v1257 = vmul.f32 %v1243, 1.442695
        %v1258 = vpow.pop %v1257
        %v1259 = vmul.f32 %v1244, 1.442695
        %v1260 = vpow.pop %v1259
        %v1261 = vsel %vm836, %v1246, 0.0
        %1262 = vadd.xlane.f32.xlu0 %v1261
        %v1263 = vpop.xlane.xlu0 %1262
        %v1264 = vsel %vm836, %v1248, 0.0
        %1265 = vadd.xlane.f32.xlu0 %v1264
        %v1266 = vpop.xlane.xlu0 %1265
        %v1267 = vsel %vm836, %v1250, 0.0
        %1268 = vadd.xlane.f32.xlu0 %v1267
        %v1269 = vpop.xlane.xlu0 %1268
        %v1270 = vsel %vm836, %v1252, 0.0
        %1271 = vadd.xlane.f32.xlu0 %v1270
        %v1272 = vpop.xlane.xlu0 %1271
        %v1273 = vsel %vm836, %v1254, 0.0
        %1274 = vadd.xlane.f32.xlu0 %v1273
        %v1275 = vpop.xlane.xlu0 %1274
        %v1276 = vsel %vm836, %v1256, 0.0
        %1277 = vadd.xlane.f32.xlu0 %v1276
        %v1278 = vpop.xlane.xlu0 %1277
        %v1279 = vsel %vm836, %v1258, 0.0
        %1280 = vadd.xlane.f32.xlu0 %v1279
        %v1281 = vpop.xlane.xlu0 %1280
        %v1282 = vsel %vm836, %v1260, 0.0
        %1283 = vadd.xlane.f32.xlu0 %v1282
        %v1284 = vpop.xlane.xlu0 %1283
        %v1285 = vrcp.pop %v1263
        %v1286 = vrcp.pop %v1266
        %v1287 = vrcp.pop %v1269
        %v1288 = vrcp.pop %v1272
        %v1289 = vrcp.pop %v1275
        %v1290 = vrcp.pop %v1278
        %v1291 = vrcp.pop %v1281
        %v1292 = vrcp.pop %v1284
        %v1293 = vmul.f32 %v1246, %v1285
        %v1294 = vmul.f32 %v1248, %v1286
        %v1295 = vmul.f32 %v1250, %v1287
        %v1296 = vmul.f32 %v1252, %v1288
        %v1297 = vmul.f32 %v1254, %v1289
        %v1298 = vmul.f32 %v1256, %v1290
        %v1299 = vmul.f32 %v1258, %v1291
        %v1300 = vmul.f32 %v1260, %v1292
        %1301 = vst.msk [vmem:[%s567] sm:$0xff] %vm836, %v1293
        %1302 = vst.msk [vmem:[%s567 + $0x8] sm:$0xff] %vm836, %v1294
        %1303 = vst.msk [vmem:[%s567 + $0x10] sm:$0xff] %vm836, %v1295
        %1304 = vst.msk [vmem:[%s567 + $0x18] sm:$0xff] %vm836, %v1296
        %1305 = vst.msk [vmem:[%s567 + $0x20] sm:$0xff] %vm836, %v1297
        %1306 = vst.msk [vmem:[%s567 + $0x28] sm:$0xff] %vm836, %v1298
        %1307 = vst.msk [vmem:[%s567 + $0x30] sm:$0xff] %vm836, %v1299
        %1308 = vst.msk [vmem:[%s567 + $0x38] sm:$0xff] %vm836, %v1300
        %v1309 = vpack.c.bf16 %v1293, %v1293
        %v1310 = vpack.c.bf16 %v1294, %v1294
        %v1311 = vpack.c.bf16 %v1295, %v1295
        %v1312 = vpack.c.bf16 %v1296, %v1296
        %v1313 = vpack.c.bf16 %v1297, %v1297
        %v1314 = vpack.c.bf16 %v1298, %v1298
        %v1315 = vpack.c.bf16 %v1299, %v1299
        %v1316 = vpack.c.bf16 %v1300, %v1300
        %v1318 = vsel %vm836, %v1309, 0
        %vm1320 = vcmask 1043456
        %v1322 = vsel %vm1320, %v828, 0
        %1324 = vmatprep.subr.bf16.mxu0 0
        %1325 = vmatpush1.bf16.msra.mxu0 0
        %1326 = vmatprep.subr.bf16.mxu0 0
        %1327 = vmatpush1.bf16.msra.mxu0 0
        %1328 = vmatprep.subr.bf16.mxu0 0
        %1329 = vmatpush1.bf16.msra.mxu0 0
        %1330 = vmatprep.subr.bf16.mxu0 0
        %1331 = vmatpush1.bf16.msra.mxu0 0
        %1332 = vmatprep.subr.bf16.mxu0 0
        %1333 = vmatpush1.bf16.msra.mxu0 0
        %1334 = vmatprep.subr.bf16.mxu0 0
        %1335 = vmatpush1.bf16.msra.mxu0 0
        %1336 = vmatprep.subr.bf16.mxu0 0
        %1337 = vmatpush1.bf16.msra.mxu0 0
        %1338 = vmatprep.subr.bf16.mxu0 0
        %1339 = vmatpush1.bf16.msra.mxu0 %v1322
        %1340 = vmatprep.subr.bf16.mxu0 0
        %1341 = vmatpush2.bf16.msra.mxu0 0
        %1342 = vmatprep.subr.bf16.mxu0 0
        %1343 = vmatpush2.bf16.msra.mxu0 0
        %1344 = vmatprep.subr.bf16.mxu0 0
        %1345 = vmatpush2.bf16.msra.mxu0 0
        %1346 = vmatprep.subr.bf16.mxu0 0
        %1347 = vmatpush2.bf16.msra.mxu0 0
        %1348 = vmatprep.subr.bf16.mxu0 0
        %1349 = vmatpush2.bf16.msra.mxu0 0
        %1350 = vmatprep.subr.bf16.mxu0 0
        %1351 = vmatpush2.bf16.msra.mxu0 0
        %1352 = vmatprep.subr.bf16.mxu0 0
        %1353 = vmatpush2.bf16.msra.mxu0 0
        %1354 = vmatprep.subr.bf16.mxu0 0
        %1355 = vmatpush2.bf16.msra.mxu0 0
        %1356 = vmatprep.mubr.bf16.mxu0 0
        %1357 = vmatmul.mubr.bf16.gmra.mxu0 %v1318
        %v1358 = vpop.f32.mrf.mxu0
        %v1359 = vadd.f32 0.0, %v1358
        %v1360 = vpop.f32.mrf.mxu0
        %v1361 = vpop.f32.mrf.mxu0
        %v1362 = vpop.f32.mrf.mxu0
        %1363 = vdwg.mxu0
        %v1365 = vsel %vm836, %v1310, 0
        %v1368 = vsel %vm1320, %v829, 0
        %1370 = vmatprep.subr.bf16.mxu0 0
        %1371 = vmatpush1.bf16.msra.mxu0 0
        %1372 = vmatprep.subr.bf16.mxu0 0
        %1373 = vmatpush1.bf16.msra.mxu0 0
        %1374 = vmatprep.subr.bf16.mxu0 0
        %1375 = vmatpush1.bf16.msra.mxu0 0
        %1376 = vmatprep.subr.bf16.mxu0 0
        %1377 = vmatpush1.bf16.msra.mxu0 0
        %1378 = vmatprep.subr.bf16.mxu0 0
        %1379 = vmatpush1.bf16.msra.mxu0 0
        %1380 = vmatprep.subr.bf16.mxu0 0
        %1381 = vmatpush1.bf16.msra.mxu0 0
        %1382 = vmatprep.subr.bf16.mxu0 0
        %1383 = vmatpush1.bf16.msra.mxu0 0
        %1384 = vmatprep.subr.bf16.mxu0 0
        %1385 = vmatpush1.bf16.msra.mxu0 %v1368
        %1386 = vmatprep.subr.bf16.mxu0 0
        %1387 = vmatpush2.bf16.msra.mxu0 0
        %1388 = vmatprep.subr.bf16.mxu0 0
        %1389 = vmatpush2.bf16.msra.mxu0 0
        %1390 = vmatprep.subr.bf16.mxu0 0
        %1391 = vmatpush2.bf16.msra.mxu0 0
        %1392 = vmatprep.subr.bf16.mxu0 0
        %1393 = vmatpush2.bf16.msra.mxu0 0
        %1394 = vmatprep.subr.bf16.mxu0 0
        %1395 = vmatpush2.bf16.msra.mxu0 0
        %1396 = vmatprep.subr.bf16.mxu0 0
        %1397 = vmatpush2.bf16.msra.mxu0 0
        %1398 = vmatprep.subr.bf16.mxu0 0
        %1399 = vmatpush2.bf16.msra.mxu0 0
        %1400 = vmatprep.subr.bf16.mxu0 0
        %1401 = vmatpush2.bf16.msra.mxu0 0
        %1402 = vmatprep.mubr.bf16.mxu0 0
        %1403 = vmatmul.mubr.bf16.gmra.mxu0 %v1365
        %v1404 = vpop.f32.mrf.mxu0
        %v1405 = vadd.f32 0.0, %v1404
        %v1406 = vpop.f32.mrf.mxu0
        %v1407 = vpop.f32.mrf.mxu0
        %v1408 = vpop.f32.mrf.mxu0
        %1409 = vdwg.mxu0
        %v1411 = vsel %vm836, %v1311, 0
        %v1414 = vsel %vm1320, %v830, 0
        %1416 = vmatprep.subr.bf16.mxu0 0
        %1417 = vmatpush1.bf16.msra.mxu0 0
        %1418 = vmatprep.subr.bf16.mxu0 0
        %1419 = vmatpush1.bf16.msra.mxu0 0
        %1420 = vmatprep.subr.bf16.mxu0 0
        %1421 = vmatpush1.bf16.msra.mxu0 0
        %1422 = vmatprep.subr.bf16.mxu0 0
        %1423 = vmatpush1.bf16.msra.mxu0 0
        %1424 = vmatprep.subr.bf16.mxu0 0
        %1425 = vmatpush1.bf16.msra.mxu0 0
        %1426 = vmatprep.subr.bf16.mxu0 0
        %1427 = vmatpush1.bf16.msra.mxu0 0
        %1428 = vmatprep.subr.bf16.mxu0 0
        %1429 = vmatpush1.bf16.msra.mxu0 0
        %1430 = vmatprep.subr.bf16.mxu0 0
        %1431 = vmatpush1.bf16.msra.mxu0 %v1414
        %1432 = vmatprep.subr.bf16.mxu0 0
        %1433 = vmatpush2.bf16.msra.mxu0 0
        %1434 = vmatprep.subr.bf16.mxu0 0
        %1435 = vmatpush2.bf16.msra.mxu0 0
        %1436 = vmatprep.subr.bf16.mxu0 0
        %1437 = vmatpush2.bf16.msra.mxu0 0
        %1438 = vmatprep.subr.bf16.mxu0 0
        %1439 = vmatpush2.bf16.msra.mxu0 0
        %1440 = vmatprep.subr.bf16.mxu0 0
        %1441 = vmatpush2.bf16.msra.mxu0 0
        %1442 = vmatprep.subr.bf16.mxu0 0
        %1443 = vmatpush2.bf16.msra.mxu0 0
        %1444 = vmatprep.subr.bf16.mxu0 0
        %1445 = vmatpush2.bf16.msra.mxu0 0
        %1446 = vmatprep.subr.bf16.mxu0 0
        %1447 = vmatpush2.bf16.msra.mxu0 0
        %1448 = vmatprep.mubr.bf16.mxu0 0
        %1449 = vmatmul.mubr.bf16.gmra.mxu0 %v1411
        %v1450 = vpop.f32.mrf.mxu0
        %v1451 = vadd.f32 0.0, %v1450
        %v1452 = vpop.f32.mrf.mxu0
        %v1453 = vpop.f32.mrf.mxu0
        %v1454 = vpop.f32.mrf.mxu0
        %1455 = vdwg.mxu0
        %v1457 = vsel %vm836, %v1312, 0
        %v1460 = vsel %vm1320, %v831, 0
        %1462 = vmatprep.subr.bf16.mxu0 0
        %1463 = vmatpush1.bf16.msra.mxu0 0
        %1464 = vmatprep.subr.bf16.mxu0 0
        %1465 = vmatpush1.bf16.msra.mxu0 0
        %1466 = vmatprep.subr.bf16.mxu0 0
        %1467 = vmatpush1.bf16.msra.mxu0 0
        %1468 = vmatprep.subr.bf16.mxu0 0
        %1469 = vmatpush1.bf16.msra.mxu0 0
        %1470 = vmatprep.subr.bf16.mxu0 0
        %1471 = vmatpush1.bf16.msra.mxu0 0
        %1472 = vmatprep.subr.bf16.mxu0 0
        %1473 = vmatpush1.bf16.msra.mxu0 0
        %1474 = vmatprep.subr.bf16.mxu0 0
        %1475 = vmatpush1.bf16.msra.mxu0 0
        %1476 = vmatprep.subr.bf16.mxu0 0
        %1477 = vmatpush1.bf16.msra.mxu0 %v1460
        %1478 = vmatprep.subr.bf16.mxu0 0
        %1479 = vmatpush2.bf16.msra.mxu0 0
        %1480 = vmatprep.subr.bf16.mxu0 0
        %1481 = vmatpush2.bf16.msra.mxu0 0
        %1482 = vmatprep.subr.bf16.mxu0 0
        %1483 = vmatpush2.bf16.msra.mxu0 0
        %1484 = vmatprep.subr.bf16.mxu0 0
        %1485 = vmatpush2.bf16.msra.mxu0 0
        %1486 = vmatprep.subr.bf16.mxu0 0
        %1487 = vmatpush2.bf16.msra.mxu0 0
        %1488 = vmatprep.subr.bf16.mxu0 0
        %1489 = vmatpush2.bf16.msra.mxu0 0
        %1490 = vmatprep.subr.bf16.mxu0 0
        %1491 = vmatpush2.bf16.msra.mxu0 0
        %1492 = vmatprep.subr.bf16.mxu0 0
        %1493 = vmatpush2.bf16.msra.mxu0 0
        %1494 = vmatprep.mubr.bf16.mxu0 0
        %1495 = vmatmul.mubr.bf16.gmra.mxu0 %v1457
        %v1496 = vpop.f32.mrf.mxu0
        %v1497 = vadd.f32 0.0, %v1496
        %v1498 = vpop.f32.mrf.mxu0
        %v1499 = vpop.f32.mrf.mxu0
        %v1500 = vpop.f32.mrf.mxu0
        %1501 = vdwg.mxu0
        %v1503 = vsel %vm836, %v1313, 0
        %v1506 = vsel %vm1320, %v832, 0
        %1508 = vmatprep.subr.bf16.mxu0 0
        %1509 = vmatpush1.bf16.msra.mxu0 0
        %1510 = vmatprep.subr.bf16.mxu0 0
        %1511 = vmatpush1.bf16.msra.mxu0 0
        %1512 = vmatprep.subr.bf16.mxu0 0
        %1513 = vmatpush1.bf16.msra.mxu0 0
        %1514 = vmatprep.subr.bf16.mxu0 0
        %1515 = vmatpush1.bf16.msra.mxu0 0
        %1516 = vmatprep.subr.bf16.mxu0 0
        %1517 = vmatpush1.bf16.msra.mxu0 0
        %1518 = vmatprep.subr.bf16.mxu0 0
        %1519 = vmatpush1.bf16.msra.mxu0 0
        %1520 = vmatprep.subr.bf16.mxu0 0
        %1521 = vmatpush1.bf16.msra.mxu0 0
        %1522 = vmatprep.subr.bf16.mxu0 0
        %1523 = vmatpush1.bf16.msra.mxu0 %v1506
        %1524 = vmatprep.subr.bf16.mxu0 0
        %1525 = vmatpush2.bf16.msra.mxu0 0
        %1526 = vmatprep.subr.bf16.mxu0 0
        %1527 = vmatpush2.bf16.msra.mxu0 0
        %1528 = vmatprep.subr.bf16.mxu0 0
        %1529 = vmatpush2.bf16.msra.mxu0 0
        %1530 = vmatprep.subr.bf16.mxu0 0
        %1531 = vmatpush2.bf16.msra.mxu0 0
        %1532 = vmatprep.subr.bf16.mxu0 0
        %1533 = vmatpush2.bf16.msra.mxu0 0
        %1534 = vmatprep.subr.bf16.mxu0 0
        %1535 = vmatpush2.bf16.msra.mxu0 0
        %1536 = vmatprep.subr.bf16.mxu0 0
        %1537 = vmatpush2.bf16.msra.mxu0 0
        %1538 = vmatprep.subr.bf16.mxu0 0
        %1539 = vmatpush2.bf16.msra.mxu0 0
        %1540 = vmatprep.mubr.bf16.mxu0 0
        %1541 = vmatmul.mubr.bf16.gmra.mxu0 %v1503
        %v1542 = vpop.f32.mrf.mxu0
        %v1543 = vadd.f32 0.0, %v1542
        %v1544 = vpop.f32.mrf.mxu0
        %v1545 = vpop.f32.mrf.mxu0
        %v1546 = vpop.f32.mrf.mxu0
        %1547 = vdwg.mxu0
        %v1549 = vsel %vm836, %v1314, 0
        %v1552 = vsel %vm1320, %v833, 0
        %1554 = vmatprep.subr.bf16.mxu0 0
        %1555 = vmatpush1.bf16.msra.mxu0 0
        %1556 = vmatprep.subr.bf16.mxu0 0
        %1557 = vmatpush1.bf16.msra.mxu0 0
        %1558 = vmatprep.subr.bf16.mxu0 0
        %1559 = vmatpush1.bf16.msra.mxu0 0
        %1560 = vmatprep.subr.bf16.mxu0 0
        %1561 = vmatpush1.bf16.msra.mxu0 0
        %1562 = vmatprep.subr.bf16.mxu0 0
        %1563 = vmatpush1.bf16.msra.mxu0 0
        %1564 = vmatprep.subr.bf16.mxu0 0
        %1565 = vmatpush1.bf16.msra.mxu0 0
        %1566 = vmatprep.subr.bf16.mxu0 0
        %1567 = vmatpush1.bf16.msra.mxu0 0
        %1568 = vmatprep.subr.bf16.mxu0 0
        %1569 = vmatpush1.bf16.msra.mxu0 %v1552
        %1570 = vmatprep.subr.bf16.mxu0 0
        %1571 = vmatpush2.bf16.msra.mxu0 0
        %1572 = vmatprep.subr.bf16.mxu0 0
        %1573 = vmatpush2.bf16.msra.mxu0 0
        %1574 = vmatprep.subr.bf16.mxu0 0
        %1575 = vmatpush2.bf16.msra.mxu0 0
        %1576 = vmatprep.subr.bf16.mxu0 0
        %1577 = vmatpush2.bf16.msra.mxu0 0
        %1578 = vmatprep.subr.bf16.mxu0 0
        %1579 = vmatpush2.bf16.msra.mxu0 0
        %1580 = vmatprep.subr.bf16.mxu0 0
        %1581 = vmatpush2.bf16.msra.mxu0 0
        %1582 = vmatprep.subr.bf16.mxu0 0
        %1583 = vmatpush2.bf16.msra.mxu0 0
        %1584 = vmatprep.subr.bf16.mxu0 0
        %1585 = vmatpush2.bf16.msra.mxu0 0
        %1586 = vmatprep.mubr.bf16.mxu0 0
        %1587 = vmatmul.mubr.bf16.gmra.mxu0 %v1549
        %v1588 = vpop.f32.mrf.mxu0
        %v1589 = vadd.f32 0.0, %v1588
        %v1590 = vpop.f32.mrf.mxu0
        %v1591 = vpop.f32.mrf.mxu0
        %v1592 = vpop.f32.mrf.mxu0
        %1593 = vdwg.mxu0
        %v1595 = vsel %vm836, %v1315, 0
        %v1598 = vsel %vm1320, %v834, 0
        %1600 = vmatprep.subr.bf16.mxu0 0
        %1601 = vmatpush1.bf16.msra.mxu0 0
        %1602 = vmatprep.subr.bf16.mxu0 0
        %1603 = vmatpush1.bf16.msra.mxu0 0
        %1604 = vmatprep.subr.bf16.mxu0 0
        %1605 = vmatpush1.bf16.msra.mxu0 0
        %1606 = vmatprep.subr.bf16.mxu0 0
        %1607 = vmatpush1.bf16.msra.mxu0 0
        %1608 = vmatprep.subr.bf16.mxu0 0
        %1609 = vmatpush1.bf16.msra.mxu0 0
        %1610 = vmatprep.subr.bf16.mxu0 0
        %1611 = vmatpush1.bf16.msra.mxu0 0
        %1612 = vmatprep.subr.bf16.mxu0 0
        %1613 = vmatpush1.bf16.msra.mxu0 0
        %1614 = vmatprep.subr.bf16.mxu0 0
        %1615 = vmatpush1.bf16.msra.mxu0 %v1598
        %1616 = vmatprep.subr.bf16.mxu0 0
        %1617 = vmatpush2.bf16.msra.mxu0 0
        %1618 = vmatprep.subr.bf16.mxu0 0
        %1619 = vmatpush2.bf16.msra.mxu0 0
        %1620 = vmatprep.subr.bf16.mxu0 0
        %1621 = vmatpush2.bf16.msra.mxu0 0
        %1622 = vmatprep.subr.bf16.mxu0 0
        %1623 = vmatpush2.bf16.msra.mxu0 0
        %1624 = vmatprep.subr.bf16.mxu0 0
        %1625 = vmatpush2.bf16.msra.mxu0 0
        %1626 = vmatprep.subr.bf16.mxu0 0
        %1627 = vmatpush2.bf16.msra.mxu0 0
        %1628 = vmatprep.subr.bf16.mxu0 0
        %1629 = vmatpush2.bf16.msra.mxu0 0
        %1630 = vmatprep.subr.bf16.mxu0 0
        %1631 = vmatpush2.bf16.msra.mxu0 0
        %1632 = vmatprep.mubr.bf16.mxu0 0
        %1633 = vmatmul.mubr.bf16.gmra.mxu0 %v1595
        %v1634 = vpop.f32.mrf.mxu0
        %v1635 = vadd.f32 0.0, %v1634
        %v1636 = vpop.f32.mrf.mxu0
        %v1637 = vpop.f32.mrf.mxu0
        %v1638 = vpop.f32.mrf.mxu0
        %1639 = vdwg.mxu0
        %v1641 = vsel %vm836, %v1316, 0
        %v1644 = vsel %vm1320, %v835, 0
        %1646 = vmatprep.subr.bf16.mxu0 0
        %1647 = vmatpush1.bf16.msra.mxu0 0
        %1648 = vmatprep.subr.bf16.mxu0 0
        %1649 = vmatpush1.bf16.msra.mxu0 0
        %1650 = vmatprep.subr.bf16.mxu0 0
        %1651 = vmatpush1.bf16.msra.mxu0 0
        %1652 = vmatprep.subr.bf16.mxu0 0
        %1653 = vmatpush1.bf16.msra.mxu0 0
        %1654 = vmatprep.subr.bf16.mxu0 0
        %1655 = vmatpush1.bf16.msra.mxu0 0
        %1656 = vmatprep.subr.bf16.mxu0 0
        %1657 = vmatpush1.bf16.msra.mxu0 0
        %1658 = vmatprep.subr.bf16.mxu0 0
        %1659 = vmatpush1.bf16.msra.mxu0 0
        %1660 = vmatprep.subr.bf16.mxu0 0
        %1661 = vmatpush1.bf16.msra.mxu0 %v1644
        %1662 = vmatprep.subr.bf16.mxu0 0
        %1663 = vmatpush2.bf16.msra.mxu0 0
        %1664 = vmatprep.subr.bf16.mxu0 0
        %1665 = vmatpush2.bf16.msra.mxu0 0
        %1666 = vmatprep.subr.bf16.mxu0 0
        %1667 = vmatpush2.bf16.msra.mxu0 0
        %1668 = vmatprep.subr.bf16.mxu0 0
        %1669 = vmatpush2.bf16.msra.mxu0 0
        %1670 = vmatprep.subr.bf16.mxu0 0
        %1671 = vmatpush2.bf16.msra.mxu0 0
        %1672 = vmatprep.subr.bf16.mxu0 0
        %1673 = vmatpush2.bf16.msra.mxu0 0
        %1674 = vmatprep.subr.bf16.mxu0 0
        %1675 = vmatpush2.bf16.msra.mxu0 0
        %1676 = vmatprep.subr.bf16.mxu0 0
        %1677 = vmatpush2.bf16.msra.mxu0 0
        %1678 = vmatprep.mubr.bf16.mxu0 0
        %1679 = vmatmul.mubr.bf16.gmra.mxu0 %v1641
        %v1680 = vpop.f32.mrf.mxu0
        %v1681 = vadd.f32 0.0, %v1680
        %v1682 = vpop.f32.mrf.mxu0
        %v1683 = vpop.f32.mrf.mxu0
        %v1684 = vpop.f32.mrf.mxu0
        %1685 = vdwg.mxu0
        %1688 = vrot.lane.b32.xlu0 %v1451, 8
        %v1689 = vpop.permute.xlu0 %1688
        %1690 = vrot.lane.b32.xlu0 %v1497, 8
        %v1691 = vpop.permute.xlu0 %1690
        %1696 = vrot.lane.b32.xlu0 %v1543, 16
        %v1697 = vpop.permute.xlu0 %1696
        %1698 = vrot.lane.b32.xlu0 %v1589, 16
        %v1699 = vpop.permute.xlu0 %1698
        %1704 = vrot.lane.b32.xlu0 %v1635, 24
        %v1705 = vpop.permute.xlu0 %1704
        %1706 = vrot.lane.b32.xlu0 %v1681, 24
        %v1707 = vpop.permute.xlu0 %1706
        %v1710 = vsel %vm836, %v1359, %v1689
        %v1711 = vsel %vm836, %v1405, %v1691
        %vm1712 = vcmask 130048
        %v1713 = vsel %vm1712, %v1710, %v1697
        %v1714 = vsel %vm1712, %v1711, %v1699
        %vm1715 = vcmask 195584
        %v1716 = vsel %vm1715, %v1713, %v1705
        %v1717 = vsel %vm1715, %v1714, %v1707
        %v1718 = vpack.c.bf16 %v1717, %v1716
        %v1719 = vld [vmem:[#allocation7] sm:$0xf]
        %v1720 = vld [vmem:[#allocation7 + $0x4] sm:$0xf]
        %v1721 = vld [vmem:[#allocation7 + $0x8] sm:$0xf]
        %v1722 = vld [vmem:[#allocation7 + $0xc] sm:$0xf]
        %v1727 = vunpack.c.l.b16 %v1719
        %v1728 = vunpack.c.l.b16 %v1720
        %v1729 = vunpack.c.l.b16 %v1721
        %v1730 = vunpack.c.l.b16 %v1722
        %v1731 = vpack.c.b16 %v1728, %v1727
        %v1732 = vpack.c.b16 %v1730, %v1729
        %v1736 = vsel %vm593, %v1718, 0
        %1738 = vmatprep.subr.bf16.mxu0 0
        %1739 = vmatpush1.bf16.msra.mxu0 0
        %1740 = vmatprep.subr.bf16.mxu0 0
        %1741 = vmatpush1.bf16.msra.mxu0 0
        %1742 = vmatprep.subr.bf16.mxu0 0
        %1743 = vmatpush1.bf16.msra.mxu0 0
        %1744 = vmatprep.subr.bf16.mxu0 0
        %1745 = vmatpush1.bf16.msra.mxu0 0
        %1746 = vmatprep.subr.bf16.mxu0 0
        %1747 = vmatpush1.bf16.msra.mxu0 0
        %1748 = vmatprep.subr.bf16.mxu0 0
        %1749 = vmatpush1.bf16.msra.mxu0 0
        %1750 = vmatprep.subr.bf16.mxu0 0
        %1751 = vmatpush1.bf16.msra.mxu0 %v1732
        %1752 = vmatprep.subr.bf16.mxu0 0
        %1753 = vmatpush1.bf16.msra.mxu0 %v1731
        %1754 = vmatprep.subr.bf16.mxu0 0
        %1755 = vmatpush2.bf16.msra.mxu0 0
        %1756 = vmatprep.subr.bf16.mxu0 0
        %1757 = vmatpush2.bf16.msra.mxu0 0
        %1758 = vmatprep.subr.bf16.mxu0 0
        %1759 = vmatpush2.bf16.msra.mxu0 0
        %1760 = vmatprep.subr.bf16.mxu0 0
        %1761 = vmatpush2.bf16.msra.mxu0 0
        %1762 = vmatprep.subr.bf16.mxu0 0
        %1763 = vmatpush2.bf16.msra.mxu0 0
        %1764 = vmatprep.subr.bf16.mxu0 0
        %1765 = vmatpush2.bf16.msra.mxu0 0
        %1766 = vmatprep.subr.bf16.mxu0 0
        %1767 = vmatpush2.bf16.msra.mxu0 0
        %1768 = vmatprep.subr.bf16.mxu0 0
        %1769 = vmatpush2.bf16.msra.mxu0 0
        %1770 = vmatprep.mubr.bf16.mxu0 0
        %1771 = vmatmul.mubr.bf16.gmra.mxu0 %v1736
        %v1772 = vpop.f32.mrf.mxu0
        %v1773 = vadd.f32 %v574, %v1772
        %v1774 = vpop.f32.mrf.mxu0
        %v1775 = vpop.f32.mrf.mxu0
        %v1776 = vadd.f32 %v575, %v1775
        %v1777 = vpop.f32.mrf.mxu0
        %1778 = vdwg.mxu0
        %v1779 = vsel %vm593, %v1773, 0.0
        %1780 = vadd.xlane.f32.xlu0 %v1779
        %v1781 = vpop.xlane.xlu0 %1780
        %v1782 = vsel %vm593, %v1776, 0.0
        %1783 = vadd.xlane.f32.xlu0 %v1782
        %v1784 = vpop.xlane.xlu0 %1783
        %v1785 = vrcp.pop 32.0
        %v1786 = vmul.f32 %v1781, %v1785
        %v1787 = vmul.f32 %v1784, %v1785
        %v1788 = vsub.f32 %v1773, %v1786
        %v1789 = vsub.f32 %v1776, %v1787
        %v1790 = vmul.f32 %v1788, %v1788
        %v1791 = vmul.f32 %v1789, %v1789
        %v1792 = vsel %vm593, %v1790, 0.0
        %1793 = vadd.xlane.f32.xlu0 %v1792
        %v1794 = vpop.xlane.xlu0 %1793
        %v1795 = vsel %vm593, %v1791, 0.0
        %1796 = vadd.xlane.f32.xlu0 %v1795
        %v1797 = vpop.xlane.xlu0 %1796
        %v1798 = vmul.f32 %v1794, %v1785
        %v1799 = vmul.f32 %v1797, %v1785
        %v1800 = vadd.f32 %v1798, 1e-06
        %v1801 = vadd.f32 %v1799, 1e-06
        %v1802 = vrsqrt.pop %v1800
        %v1803 = vrsqrt.pop %v1801
        %v1804 = vmul.f32 %v1788, %v1802
        %v1805 = vmul.f32 %v1789, %v1803
        %v1806 = vld [vmem:[#allocation8] sm:$0x1]
        %v1808 = vlaneseq
        %v1809 = vshrl.u32 %v1808, 7
        %v1810 = vsub.s32 0, %v1809
        %v1811 = vrot.slane %v1806, %v1810
        %v1813 = vmul.f32 %v1804, %v1811
        %v1814 = vmul.f32 %v1805, %v1811
        %v1815 = vld [vmem:[#allocation10] sm:$0x1]
        %v1817 = vlaneseq
        %v1818 = vshrl.u32 %v1817, 7
        %v1819 = vsub.s32 0, %v1818
        %v1820 = vrot.slane %v1815, %v1819
        %v1822 = vadd.f32 %v1813, %v1820
        %v1823 = vadd.f32 %v1814, %v1820
        %v1824 = vpack.c.bf16 %v1823, %v1822
        %v1825 = vld [vmem:[#allocation11] sm:$0xf]
        %v1826 = vld [vmem:[#allocation11 + $0x4] sm:$0xf]
        %v1827 = vld [vmem:[#allocation11 + $0x8] sm:$0xf]
        %v1828 = vld [vmem:[#allocation11 + $0xc] sm:$0xf]
        %v1829 = vld [vmem:[#allocation13] sm:$0x1]
        %v1831 = vlaneseq
        %v1832 = vshrl.u32 %v1831, 7
        %v1833 = vsub.s32 0, %v1832
        %v1834 = vrot.slane %v1829, %v1833
        %v1840 = vunpack.c.l.b16 %v1825
        %v1841 = vunpack.c.l.b16 %v1826
        %v1842 = vunpack.c.l.b16 %v1827
        %v1843 = vunpack.c.l.b16 %v1828
        %v1844 = vpack.c.b16 %v1841, %v1840
        %v1845 = vpack.c.b16 %v1843, %v1842
        %v1849 = vsel %vm593, %v1824, 0
        %1851 = vmatprep.subr.bf16.mxu0 0
        %1852 = vmatpush1.bf16.msra.mxu0 0
        %1853 = vmatprep.subr.bf16.mxu0 0
        %1854 = vmatpush1.bf16.msra.mxu0 0
        %1855 = vmatprep.subr.bf16.mxu0 0
        %1856 = vmatpush1.bf16.msra.mxu0 0
        %1857 = vmatprep.subr.bf16.mxu0 0
        %1858 = vmatpush1.bf16.msra.mxu0 0
        %1859 = vmatprep.subr.bf16.mxu0 0
        %1860 = vmatpush1.bf16.msra.mxu0 0
        %1861 = vmatprep.subr.bf16.mxu0 0
        %1862 = vmatpush1.bf16.msra.mxu0 0
        %1863 = vmatprep.subr.bf16.mxu0 0
        %1864 = vmatpush1.bf16.msra.mxu0 %v1845
        %1865 = vmatprep.subr.bf16.mxu0 0
        %1866 = vmatpush1.bf16.msra.mxu0 %v1844
        %1867 = vmatprep.subr.bf16.mxu0 0
        %1868 = vmatpush2.bf16.msra.mxu0 0
        %1869 = vmatprep.subr.bf16.mxu0 0
        %1870 = vmatpush2.bf16.msra.mxu0 0
        %1871 = vmatprep.subr.bf16.mxu0 0
        %1872 = vmatpush2.bf16.msra.mxu0 0
        %1873 = vmatprep.subr.bf16.mxu0 0
        %1874 = vmatpush2.bf16.msra.mxu0 0
        %1875 = vmatprep.subr.bf16.mxu0 0
        %1876 = vmatpush2.bf16.msra.mxu0 0
        %1877 = vmatprep.subr.bf16.mxu0 0
        %1878 = vmatpush2.bf16.msra.mxu0 0
        %1879 = vmatprep.subr.bf16.mxu0 0
        %1880 = vmatpush2.bf16.msra.mxu0 0
        %1881 = vmatprep.subr.bf16.mxu0 0
        %1882 = vmatpush2.bf16.msra.mxu0 0
        %1883 = vmatprep.mubr.bf16.mxu0 0
        %1884 = vmatmul.mubr.bf16.gmra.mxu0 %v1849
        %v1885 = vpop.f32.mrf.mxu0
        %v1886 = vadd.f32 %v1834, %v1885
        %v1887 = vpop.f32.mrf.mxu0
        %v1888 = vpop.f32.mrf.mxu0
        %v1889 = vadd.f32 %v1834, %v1888
        %v1890 = vpop.f32.mrf.mxu0
        %1891 = vdwg.mxu0
        %v1892 = vmax.f32 %v1886, 0.0
        %v1893 = vmax.f32 %v1889, 0.0
        %v1894 = vpack.c.bf16 %v1893, %v1892
        %v1895 = vld [vmem:[%s9] sm:$0xf]
        %v1896 = vld [vmem:[%s9 + $0x4] sm:$0xf]
        %v1897 = vld [vmem:[%s9 + $0x8] sm:$0xf]
        %v1898 = vld [vmem:[%s9 + $0xc] sm:$0xf]
        %v1899 = vld [vmem:[%s9 + $0x10] sm:$0xf]
        %v1900 = vld [vmem:[%s9 + $0x14] sm:$0xf]
        %v1901 = vld [vmem:[%s9 + $0x18] sm:$0xf]
        %v1902 = vld [vmem:[%s9 + $0x1c] sm:$0xf]
        %v1903 = vld [vmem:[%s10] sm:$0x1]
        %v1905 = vlaneseq
        %v1906 = vshrl.u32 %v1905, 7
        %v1907 = vsub.s32 0, %v1906
        %v1908 = vrot.slane %v1903, %v1907
        %v1918 = vunpack.c.l.b16 %v1895
        %v1919 = vunpack.c.l.b16 %v1896
        %v1920 = vunpack.c.l.b16 %v1897
        %v1921 = vunpack.c.l.b16 %v1898
        %v1922 = vunpack.c.l.b16 %v1899
        %v1923 = vunpack.c.l.b16 %v1900
        %v1924 = vunpack.c.l.b16 %v1901
        %v1925 = vunpack.c.l.b16 %v1902
        %v1926 = vpack.c.b16 %v1919, %v1918
        %v1927 = vpack.c.b16 %v1921, %v1920
        %v1928 = vpack.c.b16 %v1923, %v1922
        %v1929 = vpack.c.b16 %v1925, %v1924
        %vm1934 = vcmask 523264
        %v1936 = vsel %vm1934, %v1894, 0
        %1938 = vmatprep.subr.bf16.mxu0 0
        %1939 = vmatpush1.bf16.msra.mxu0 0
        %1940 = vmatprep.subr.bf16.mxu0 0
        %1941 = vmatpush1.bf16.msra.mxu0 0
        %1942 = vmatprep.subr.bf16.mxu0 0
        %1943 = vmatpush1.bf16.msra.mxu0 0
        %1944 = vmatprep.subr.bf16.mxu0 0
        %1945 = vmatpush1.bf16.msra.mxu0 0
        %1946 = vmatprep.subr.bf16.mxu0 0
        %1947 = vmatpush1.bf16.msra.mxu0 %v1929
        %1948 = vmatprep.subr.bf16.mxu0 0
        %1949 = vmatpush1.bf16.msra.mxu0 %v1928
        %1950 = vmatprep.subr.bf16.mxu0 0
        %1951 = vmatpush1.bf16.msra.mxu0 %v1927
        %1952 = vmatprep.subr.bf16.mxu0 0
        %1953 = vmatpush1.bf16.msra.mxu0 %v1926
        %1954 = vmatprep.subr.bf16.mxu0 0
        %1955 = vmatpush2.bf16.msra.mxu0 0
        %1956 = vmatprep.subr.bf16.mxu0 0
        %1957 = vmatpush2.bf16.msra.mxu0 0
        %1958 = vmatprep.subr.bf16.mxu0 0
        %1959 = vmatpush2.bf16.msra.mxu0 0
        %1960 = vmatprep.subr.bf16.mxu0 0
        %1961 = vmatpush2.bf16.msra.mxu0 0
        %1962 = vmatprep.subr.bf16.mxu0 0
        %1963 = vmatpush2.bf16.msra.mxu0 0
        %1964 = vmatprep.subr.bf16.mxu0 0
        %1965 = vmatpush2.bf16.msra.mxu0 0
        %1966 = vmatprep.subr.bf16.mxu0 0
        %1967 = vmatpush2.bf16.msra.mxu0 0
        %1968 = vmatprep.subr.bf16.mxu0 0
        %1969 = vmatpush2.bf16.msra.mxu0 0
        %1970 = vmatprep.mubr.bf16.mxu0 0
        %1971 = vmatmul.mubr.bf16.gmra.mxu0 %v1936
        %v1972 = vpop.f32.mrf.mxu0
        %v1973 = vadd.f32 %v1908, %v1972
        %v1974 = vpop.f32.mrf.mxu0
        %v1975 = vpop.f32.mrf.mxu0
        %v1976 = vadd.f32 %v1908, %v1975
        %v1977 = vpop.f32.mrf.mxu0
        %1978 = vdwg.mxu0
        %v1979 = vadd.f32 %v1973, %v1822
        %v1980 = vadd.f32 %v1976, %v1823
        %v1981 = vsel %vm593, %v1979, 0.0
        %1982 = vadd.xlane.f32.xlu0 %v1981
        %v1983 = vpop.xlane.xlu0 %1982
        %v1984 = vsel %vm593, %v1980, 0.0
        %1985 = vadd.xlane.f32.xlu0 %v1984
        %v1986 = vpop.xlane.xlu0 %1985
        %v1987 = vmul.f32 %v1983, %v1785
        %v1988 = vmul.f32 %v1986, %v1785
        %v1989 = vsub.f32 %v1979, %v1987
        %v1990 = vsub.f32 %v1980, %v1988
        %v1991 = vmul.f32 %v1989, %v1989
        %v1992 = vmul.f32 %v1990, %v1990
        %v1993 = vsel %vm593, %v1991, 0.0
        %1994 = vadd.xlane.f32.xlu0 %v1993
        %v1995 = vpop.xlane.xlu0 %1994
        %v1996 = vsel %vm593, %v1992, 0.0
        %1997 = vadd.xlane.f32.xlu0 %v1996
        %v1998 = vpop.xlane.xlu0 %1997
        %v1999 = vmul.f32 %v1995, %v1785
        %v2000 = vmul.f32 %v1998, %v1785
        %v2001 = vadd.f32 %v1999, 1e-06
        %v2002 = vadd.f32 %v2000, 1e-06
        %v2003 = vrsqrt.pop %v2001
        %v2004 = vrsqrt.pop %v2002
        %v2005 = vmul.f32 %v1989, %v2003
        %v2006 = vmul.f32 %v1990, %v2004
        %v2007 = vld [vmem:[%s11] sm:$0x1]
        %v2009 = vlaneseq
        %v2010 = vshrl.u32 %v2009, 7
        %v2011 = vsub.s32 0, %v2010
        %v2012 = vrot.slane %v2007, %v2011
        %v2014 = vmul.f32 %v2005, %v2012
        %v2015 = vmul.f32 %v2006, %v2012
        %v2016 = vld [vmem:[%s12] sm:$0x1]
        %v2018 = vlaneseq
        %v2019 = vshrl.u32 %v2018, 7
        %v2020 = vsub.s32 0, %v2019
        %v2021 = vrot.slane %v2016, %v2020
        %v2023 = vadd.f32 %v2014, %v2021
        %v2024 = vadd.f32 %v2015, %v2021
        %2025 = vst.msk [vmem:[%s560] sm:$0xff] %vm593, %v2023
        %2026 = vst.msk [vmem:[%s560 + $0x8] sm:$0xff] %vm593, %v2024
        %s2027 = sand.u32 %s322, 1
        %s2028 = scalar_lea.sflag [#allocation4], %s2027
        %s2029 = sand.u32 %s322, 1
        %s2030 = smul.addr %s2029, 16
        %s2031 = scalar_lea.vmem [#allocation14], %s2030
        %s2032 = sand.u32 %s348, 1
        %s2033 = scalar_lea.sflag [#allocation16], %s2032
        %s2034 = sand.u32 %s348, 1
        %s2035 = smul.addr %s2034, 64
        %s2036 = scalar_lea.vmem [#allocation15], %s2035
        // Predicated region
        $region101: #{tpu_custom_call.1} parent=71 // pred_check
          %p2037 = pneg %p332
        $region102: #{tpu_custom_call.1} parent=71 // pred_check_branch
          %2039 = sbr.rel (%p2037) target = $region104
        $region103: #{tpu_custom_call.1} parent=71 // pred_region
          %s2041 = ssub.s32 256, 256
          %2042 = vsyncadd %s2028, %s2041
          %s2043 = smul.addr %s36, 2
          %s2044 = smul.addr %s2043, 128
          %s2045 = scalar_lea.hbm %s13, %s2044
          %s2046 = sshll.u32 %s2031, 4
          %s2047 = int_to_ptr.vmem [resolvable:$true] %s2046
          %2052 = dma.vmem_to_hbm [thread:$0]  %s2047, 256, %s2045, %s2028, 128, 128, 8
        $region104: #{tpu_custom_call.1} parent=71 // pred_fallthru
          _
        // Predicated region
        $region105: #{tpu_custom_call.1} parent=71 // pred_check
          %p2053 = pneg %p358
        $region106: #{tpu_custom_call.1} parent=71 // pred_check_branch
          %2055 = sbr.rel (%p2053) target = $region108
        $region107: #{tpu_custom_call.1} parent=71 // pred_region
          %s2057 = ssub.s32 1024, 1024
          %2058 = vsyncadd %s2033, %s2057
          %s2059 = smul.addr %s36, 8
          %s2060 = smul.addr %s2059, 128
          %s2061 = scalar_lea.hbm %s14, %s2060
          %s2062 = sshll.u32 %s2036, 4
          %s2063 = int_to_ptr.vmem [resolvable:$true] %s2062
          %2068 = dma.vmem_to_hbm [thread:$0]  %s2063, 1024, %s2061, %s2033, 128, 128, 8
        $region108: #{tpu_custom_call.1} parent=71 // pred_fallthru
          _
      $region72: #{tpu_custom_call.1} parent=5 // pred_fallthru
        _
      %p2069 = scmp.le.s32.totalorder 2, %s31
      // Predicated region
      $region109: #{tpu_custom_call.1} parent=5 // pred_check
        %p2070 = pneg %p2069
      $region110: #{tpu_custom_call.1} parent=5 // pred_check_branch
        %2072 = sbr.rel (%p2070) target = $region112
      $region111: #{tpu_custom_call.1} parent=5 // pred_region
        %s2073 = ssub.s32 %s31, 2
        // Predicated region
        $region113: #{tpu_custom_call.1} parent=111 // pred_check
          %p2074 = pneg %p338
        $region114: #{tpu_custom_call.1} parent=111 // pred_check_branch
          %2076 = sbr.rel (%p2074) target = $region116
        $region115: #{tpu_custom_call.1} parent=111 // pred_region
          %s2077 = sand.u32 %s323, 1
          %s2078 = scalar_lea.sflag [#allocation4], %s2077
          %s2079 = sand.u32 %s323, 1
          %s2080 = smul.addr %s2079, 16
          %s2081 = scalar_lea.vmem [#allocation14], %s2080
          %2082 = dma.done %s2078, 256
        $region116: #{tpu_custom_call.1} parent=111 // pred_fallthru
          _
        // Predicated region
        $region117: #{tpu_custom_call.1} parent=111 // pred_check
          %p2083 = pneg %p364
        $region118: #{tpu_custom_call.1} parent=111 // pred_check_branch
          %2085 = sbr.rel (%p2083) target = $region120
        $region119: #{tpu_custom_call.1} parent=111 // pred_region
          %s2086 = sand.u32 %s349, 1
          %s2087 = scalar_lea.sflag [#allocation16], %s2086
          %s2088 = sand.u32 %s349, 1
          %s2089 = smul.addr %s2088, 64
          %s2090 = scalar_lea.vmem [#allocation15], %s2089
          %2091 = dma.done %s2087, 1024
        $region120: #{tpu_custom_call.1} parent=111 // pred_fallthru
          _
      $region112: #{tpu_custom_call.1} parent=5 // pred_fallthru
        _
    $region6: #{tpu_custom_call.1} parent=1 // loop_footer
      %s35 = sadd.s32 1, %s31
    $region7: #{tpu_custom_call.1} parent=1 // loop_footer_branch
      %30 = sbr.rel target = $region3
    $region8: #{tpu_custom_call.1} parent=1 // loop_exit
      _
    %2092 = vsyncpa [#allocation3], 1
    %s2093 = scalar_lea.sflag [#allocation3], 1
    %2094 = vsyncpa %s2093, 1
    %2095 = vsyncpa [#allocation6], 1
    %2096 = vsyncpa [#allocation9], 1
    %2097 = vsyncpa [#allocation12], 1
    %2098 = vsyncpa [#allocation4], 1
    %s2099 = scalar_lea.sflag [#allocation4], 1
    %2100 = vsyncpa %s2099, 1
    %2101 = vsyncpa [#allocation16], 1
    %s2102 = scalar_lea.sflag [#allocation16], 1
    %2103 = vsyncpa %s2102, 1

</llo_original>
